<compile_context>
chip_gen: v7x
topology: tpu7x:2x2x1
jax: 0.10.0
libtpu: 0.0.40
codegen_flags: <defaults>
</compile_context>

<pallas_src>
import jax
import jax.numpy as jnp
from jax.experimental import pallas as pl
from jax.experimental.pallas import tpu as pltpu


_EPS = 1e-12  # F.normalize default eps (p=2, dim=1)


# ----------------------------------------------------------------------------
# Fused kernel
# ----------------------------------------------------------------------------
def _fused_gcn_kernel(a_ref, item_side_ref, user_side_ref, uw_ref, iw_ref,
                      u_out_ref, i_out_ref,
                      u_raw_ref, i_raw_ref,
                      u_norm_ref, i_norm_ref):
    """Fused GCNLayer forward.

    a_ref        : (B, U, I)   dense per-behavior adjacency
    item_side_ref: (B, I, Din) item-side features feeding the user update
    user_side_ref: (B, U, Din) user-side features feeding the item update
    uw_ref/iw_ref: (Din, Dout)
    u_out_ref    : (U, Dout)   sigmoid(mean_b(Pu) @ u_w)
    i_out_ref    : (I, Dout)   sigmoid(mean_b(Pi) @ i_w)
    u_raw_ref    : (U, B*Din)  Pu[b] stored at columns [b*Din, (b+1)*Din)
    i_raw_ref    : (I, B*Din)
    u_norm_ref   : (U, B*Din)  F.normalize(Pu, dim=node axis), same layout
    i_norm_ref   : (I, B*Din)
    """
    B = a_ref.shape[0]
    Din = item_side_ref.shape[2]

    # --- 1) batched "spmm", statically unrolled over behaviors -------------
    # user side:  Pu[b] = A[b]   @ item_side[b]
    # item side:  Pi[b] = A[b]^T @ user_side[b]   (dot_general, no AT tensor)
    pu_list = []
    pi_list = []
    for b in range(B):
        a_b = a_ref[b]                                              # (U, I)
        pu_b = jnp.dot(a_b, item_side_ref[b],
                       preferred_element_type=jnp.float32)          # (U, Din)
        pi_b = jax.lax.dot_general(
            a_b, user_side_ref[b],
            dimension_numbers=(((0,), (0,)), ((), ())),             # A^T @ X
            preferred_element_type=jnp.float32)                     # (I, Din)
        pu_list.append(pu_b)
        pi_list.append(pi_b)
        # write into the lane-dense [N, B*Din] slab
        u_raw_ref[:, b * Din:(b + 1) * Din] = pu_b
        i_raw_ref[:, b * Din:(b + 1) * Din] = pi_b

    # --- 2) mean over behaviors -> projection -> sigmoid (all f32) ---------
    sum_u = pu_list[0]
    sum_i = pi_list[0]
    for b in range(1, B):
        sum_u = sum_u + pu_list[b]
        sum_i = sum_i + pi_list[b]
    inv_b = jnp.float32(1.0 / B)
    mean_u = sum_u * inv_b                                          # (U, Din)
    mean_i = sum_i * inv_b                                          # (I, Din)
    u_out_ref[...] = jax.nn.sigmoid(
        jnp.dot(mean_u, uw_ref[...], preferred_element_type=jnp.float32))
    i_out_ref[...] = jax.nn.sigmoid(
        jnp.dot(mean_i, iw_ref[...], preferred_element_type=jnp.float32))

    # --- 3) F.normalize(x, p=2, dim=1 (node axis), eps=1e-12) --------------
    # x / max(||x||, eps) == x * rsqrt(max(sum(x^2), eps^2))   (EUP rsqrt)
    # Done lane-dense on the whole [N, B*Din] slab: one sublane reduction per
    # 128-lane row group, unmasked full-width stores.
    eps2 = jnp.float32(_EPS * _EPS)
    pu = u_raw_ref[...]                                             # (U, B*Din)
    pi = i_raw_ref[...]                                             # (I, B*Din)
    sq_u = jnp.sum(pu * pu, axis=0, keepdims=True)                  # (1, B*Din)
    sq_i = jnp.sum(pi * pi, axis=0, keepdims=True)
    u_norm_ref[...] = pu * jax.lax.rsqrt(jnp.maximum(sq_u, eps2))
    i_norm_ref[...] = pi * jax.lax.rsqrt(jnp.maximum(sq_i, eps2))


# ----------------------------------------------------------------------------
# Wrapper: one pallas_call, whole problem resident in VMEM (tiny shapes).
# For realistic node counts this would become a tiled/accumulator matmul with
# grid=(B, M//tm, N//tn, K//tk) and a parallel axis for v7x's two TensorCores.
# ----------------------------------------------------------------------------
def gcn_layer_forward(params, behavior_mats,
                      user_embedding, item_embedding,
                      uu_embed0, ii_embed0,
                      uu_embed1, ii_embed1,
                      uu_embed2, ii_embed2):
    """behavior order: index 0='click', 1='fav', 2='cart', 3='buy'."""
    B = 4
    A = jnp.stack([behavior_mats[b]["A"] for b in range(B)], axis=0)   # (B,U,I)
    item_side = jnp.stack([ii_embed0, ii_embed1, ii_embed2, item_embedding], 0)
    user_side = jnp.stack([uu_embed0, uu_embed1, uu_embed2, user_embedding], 0)

    U, I = A.shape[1], A.shape[2]
    Din = item_side.shape[2]
    Dout = params["u_w"].shape[1]

    out_shapes = (
        jax.ShapeDtypeStruct((U, Dout), jnp.float32),       # user proj+sigmoid
        jax.ShapeDtypeStruct((I, Dout), jnp.float32),       # item proj+sigmoid
        jax.ShapeDtypeStruct((U, B * Din), jnp.float32),    # user raw slab
        jax.ShapeDtypeStruct((I, B * Din), jnp.float32),    # item raw slab
        jax.ShapeDtypeStruct((U, B * Din), jnp.float32),    # user normalized slab
        jax.ShapeDtypeStruct((I, B * Din), jnp.float32),    # item normalized slab
    )

    def full_spec(shape):
        nd = len(shape)
        return pl.BlockSpec(shape, lambda i, _nd=nd: (0,) * _nd)

    outs = pl.pallas_call(
        _fused_gcn_kernel,
        out_shape=out_shapes,
        grid=(1,),
        in_specs=[full_spec(A.shape), full_spec(item_side.shape),
                  full_spec(user_side.shape),
                  full_spec(params["u_w"].shape), full_spec(params["i_w"].shape)],
        out_specs=tuple(full_spec(s.shape) for s in out_shapes),
        compiler_params=pltpu.CompilerParams(
            dimension_semantics=("arbitrary",)),
    )(A, item_side, user_side, params["u_w"], params["i_w"])

    u_out, i_out, u_raw_slab, i_raw_slab, u_norm_slab, i_norm_slab = outs

    def slab_to_stack(slab, n):
        # [N, B*Din] (behavior b at cols b*Din:(b+1)*Din)  ->  [B, N, Din]
        return slab.reshape(n, B, Din).transpose(1, 0, 2)

    user_raw = slab_to_stack(u_raw_slab, U)
    item_raw = slab_to_stack(i_raw_slab, I)
    user_norm = slab_to_stack(u_norm_slab, U)
    item_norm = slab_to_stack(i_norm_slab, I)

    # matches the PyTorch return tuple
    return (u_out, i_out, user_norm, item_norm,
            user_raw[0], item_raw[0],
            user_raw[1], item_raw[1],
            user_raw[2], item_raw[2])


# ----------------------------------------------------------------------------
# Deterministic parameter / input construction + run + reference check
# ----------------------------------------------------------------------------
def xavier_uniform(key, shape):
    fan_in, fan_out = shape
    limit = (6.0 / (fan_in + fan_out)) ** 0.5
    return jax.random.uniform(key, shape, jnp.float32, -limit, limit)


if __name__ == "__main__":
    userNum, itemNum = 48, 32
    in_dim, out_dim = 32, 16
    n_behaviors = 4  # ['click', 'fav', 'cart', 'buy']

    key = jax.random.PRNGKey(0)
    keys = jax.random.split(key, 16)

    params = {
        "u_w": xavier_uniform(keys[0], (in_dim, out_dim)),
        "i_w": xavier_uniform(keys[1], (in_dim, out_dim)),
    }

    # dense stand-ins for the sparse behavior adjacency matrices (A only; the
    # transposed contraction is done inside the kernel)
    behavior_mats = {}
    for b in range(n_behaviors):
        a = jax.random.uniform(keys[2 + b], (userNum, itemNum), jnp.float32)
        a = jnp.where(a > 0.7, a, 0.0)          # sparse-ish structure
        behavior_mats[b] = {"A": a}

    user_embedding = jax.random.normal(keys[6], (userNum, in_dim), jnp.float32)
    item_embedding = jax.random.normal(keys[7], (itemNum, in_dim), jnp.float32)
    uu_embed0 = jax.random.normal(keys[8], (userNum, in_dim), jnp.float32)
    ii_embed0 = jax.random.normal(keys[9], (itemNum, in_dim), jnp.float32)
    uu_embed1 = jax.random.normal(keys[10], (userNum, in_dim), jnp.float32)
    ii_embed1 = jax.random.normal(keys[11], (itemNum, in_dim), jnp.float32)
    uu_embed2 = jax.random.normal(keys[12], (userNum, in_dim), jnp.float32)
    ii_embed2 = jax.random.normal(keys[13], (itemNum, in_dim), jnp.float32)

    outs = gcn_layer_forward(params, behavior_mats,
                             user_embedding, item_embedding,
                             uu_embed0, ii_embed0,
                             uu_embed1, ii_embed1,
                             uu_embed2, ii_embed2)
    outs = jax.block_until_ready(outs)

    # pure-JAX reference (uses an explicit transpose, validating the in-kernel
    # dot_general contraction that replaces AT)
    A = jnp.stack([behavior_mats[b]["A"] for b in range(4)], 0)
    AT = jnp.transpose(A, (0, 2, 1))
    item_side = jnp.stack([ii_embed0, ii_embed1, ii_embed2, item_embedding], 0)
    user_side = jnp.stack([uu_embed0, uu_embed1, uu_embed2, user_embedding], 0)
    u_stack = jnp.einsum("bui,bid->bud", A, item_side)
    i_stack = jnp.einsum("biu,bud->bid", AT, user_side)
    ref_u = jax.nn.sigmoid(jnp.mean(u_stack, 0) @ params["u_w"])
    ref_i = jax.nn.sigmoid(jnp.mean(i_stack, 0) @ params["i_w"])
    ref_un = u_stack / jnp.maximum(
        jnp.linalg.norm(u_stack, axis=1, keepdims=True), 1e-12)
    ref_in = i_stack / jnp.maximum(
        jnp.linalg.norm(i_stack, axis=1, keepdims=True), 1e-12)

    assert jnp.allclose(outs[0], ref_u, atol=1e-5, rtol=1e-4)
    assert jnp.allclose(outs[1], ref_i, atol=1e-5, rtol=1e-4)
    assert jnp.allclose(outs[2], ref_un, atol=1e-4, rtol=1e-4)
    assert jnp.allclose(outs[3], ref_in, atol=1e-4, rtol=1e-4)
    assert jnp.allclose(outs[4], u_stack[0], atol=1e-5, rtol=1e-4)
    assert jnp.allclose(outs[5], i_stack[0], atol=1e-5, rtol=1e-4)
    assert jnp.allclose(outs[6], u_stack[1], atol=1e-5, rtol=1e-4)
    assert jnp.allclose(outs[7], i_stack[1], atol=1e-5, rtol=1e-4)
    assert jnp.allclose(outs[8], u_stack[2], atol=1e-5, rtol=1e-4)
    assert jnp.allclose(outs[9], i_stack[2], atol=1e-5, rtol=1e-4)

    print("KERNEL_OK")
</pallas_src>

<mosaic_0001>
module attributes {stable_mosaic.version = 11 : i64} {
  func.func @_fused_gcn_kernel(%arg0: i32, %arg1: memref<4x48x32xf32, #tpu.memory_space<vmem>>, %arg2: memref<4x32x32xf32, #tpu.memory_space<vmem>>, %arg3: memref<4x48x32xf32, #tpu.memory_space<vmem>>, %arg4: memref<32x16xf32, #tpu.memory_space<vmem>>, %arg5: memref<32x16xf32, #tpu.memory_space<vmem>>, %arg6: memref<48x16xf32, #tpu.memory_space<vmem>>, %arg7: memref<32x16xf32, #tpu.memory_space<vmem>>, %arg8: memref<48x128xf32, #tpu.memory_space<vmem>>, %arg9: memref<32x128xf32, #tpu.memory_space<vmem>>, %arg10: memref<48x128xf32, #tpu.memory_space<vmem>>, %arg11: memref<32x128xf32, #tpu.memory_space<vmem>>) attributes {dimension_semantics = [#tpu.dimension_semantics<arbitrary>], iteration_bounds = array<i64: 1>, scalar_prefetch = 0 : i64, scratch_operands = 0 : i64, tpu.core_type = #tpu.core_type<tc>, window_params = [{pipeline_mode = #tpu.pipeline_mode<synchronous>, transform_indices = @transform_0, window_bounds = array<i64: 4, 48, 32>}, {pipeline_mode = #tpu.pipeline_mode<synchronous>, transform_indices = @transform_1, window_bounds = array<i64: 4, 32, 32>}, {pipeline_mode = #tpu.pipeline_mode<synchronous>, transform_indices = @transform_2, window_bounds = array<i64: 4, 48, 32>}, {pipeline_mode = #tpu.pipeline_mode<synchronous>, transform_indices = @transform_3, window_bounds = array<i64: 32, 16>}, {pipeline_mode = #tpu.pipeline_mode<synchronous>, transform_indices = @transform_4, window_bounds = array<i64: 32, 16>}, {pipeline_mode = #tpu.pipeline_mode<synchronous>, transform_indices = @transform_5, window_bounds = array<i64: 48, 16>}, {pipeline_mode = #tpu.pipeline_mode<synchronous>, transform_indices = @transform_6, window_bounds = array<i64: 32, 16>}, {pipeline_mode = #tpu.pipeline_mode<synchronous>, transform_indices = @transform_7, window_bounds = array<i64: 48, 128>}, {pipeline_mode = #tpu.pipeline_mode<synchronous>, transform_indices = @transform_8, window_bounds = array<i64: 32, 128>}, {pipeline_mode = #tpu.pipeline_mode<synchronous>, transform_indices = @transform_9, window_bounds = array<i64: 48, 128>}, {pipeline_mode = #tpu.pipeline_mode<synchronous>, transform_indices = @transform_10, window_bounds = array<i64: 32, 128>}]} {
    %c0 = arith.constant 0 : index
    %c0_0 = arith.constant 0 : index
    %c0_1 = arith.constant 0 : index
    %0 = vector.load %arg1[%c0, %c0_0, %c0_1] : memref<4x48x32xf32, #tpu.memory_space<vmem>>, vector<1x48x32xf32>
    %1 = vector.shape_cast %0 : vector<1x48x32xf32> to vector<48x32xf32>
    %c0_2 = arith.constant 0 : index
    %c0_3 = arith.constant 0 : index
    %c0_4 = arith.constant 0 : index
    %2 = vector.load %arg2[%c0_2, %c0_3, %c0_4] : memref<4x32x32xf32, #tpu.memory_space<vmem>>, vector<1x32x32xf32>
    %3 = vector.shape_cast %2 : vector<1x32x32xf32> to vector<32x32xf32>
    %cst = arith.constant dense<0.000000e+00> : vector<48x32xf32>
    %4 = tpu.matmul %1, %3, %cst {dimension_numbers = #tpu.dot_dimension_numbers<[1], [0], [0], [1], [0, 0, 1, 1], [], []>} : vector<48x32xf32>, vector<32x32xf32>, vector<48x32xf32> -> vector<48x32xf32>
    %c0_5 = arith.constant 0 : index
    %c0_6 = arith.constant 0 : index
    %c0_7 = arith.constant 0 : index
    %5 = vector.load %arg3[%c0_5, %c0_6, %c0_7] : memref<4x48x32xf32, #tpu.memory_space<vmem>>, vector<1x48x32xf32>
    %6 = vector.shape_cast %5 : vector<1x48x32xf32> to vector<48x32xf32>
    %cst_8 = arith.constant dense<0.000000e+00> : vector<32x32xf32>
    %7 = tpu.matmul %1, %6, %cst_8 {dimension_numbers = #tpu.dot_dimension_numbers<[0], [0], [1], [1], [0, 1, 1, 1], [], []>} : vector<48x32xf32>, vector<48x32xf32>, vector<32x32xf32> -> vector<32x32xf32>
    %c0_9 = arith.constant 0 : index
    %c0_10 = arith.constant 0 : index
    %8 = vector.load %arg8[%c0_9, %c0_10] : memref<48x128xf32, #tpu.memory_space<vmem>>, vector<48x32xf32>
    tpu.vector_store %arg8[%c0_9, %c0_10], %4 {strides = array<i32>} : memref<48x128xf32, #tpu.memory_space<vmem>>, vector<48x32xf32>,
    %c0_11 = arith.constant 0 : index
    %c0_12 = arith.constant 0 : index
    %9 = vector.load %arg9[%c0_11, %c0_12] : memref<32x128xf32, #tpu.memory_space<vmem>>, vector<32x32xf32>
    tpu.vector_store %arg9[%c0_11, %c0_12], %7 {strides = array<i32>} : memref<32x128xf32, #tpu.memory_space<vmem>>, vector<32x32xf32>,
    %c1 = arith.constant 1 : index
    %c0_13 = arith.constant 0 : index
    %c0_14 = arith.constant 0 : index
    %10 = vector.load %arg1[%c1, %c0_13, %c0_14] : memref<4x48x32xf32, #tpu.memory_space<vmem>>, vector<1x48x32xf32>
    %11 = vector.shape_cast %10 : vector<1x48x32xf32> to vector<48x32xf32>
    %c1_15 = arith.constant 1 : index
    %c0_16 = arith.constant 0 : index
    %c0_17 = arith.constant 0 : index
    %12 = vector.load %arg2[%c1_15, %c0_16, %c0_17] : memref<4x32x32xf32, #tpu.memory_space<vmem>>, vector<1x32x32xf32>
    %13 = vector.shape_cast %12 : vector<1x32x32xf32> to vector<32x32xf32>
    %cst_18 = arith.constant dense<0.000000e+00> : vector<48x32xf32>
    %14 = tpu.matmul %11, %13, %cst_18 {dimension_numbers = #tpu.dot_dimension_numbers<[1], [0], [0], [1], [0, 0, 1, 1], [], []>} : vector<48x32xf32>, vector<32x32xf32>, vector<48x32xf32> -> vector<48x32xf32>
    %c1_19 = arith.constant 1 : index
    %c0_20 = arith.constant 0 : index
    %c0_21 = arith.constant 0 : index
    %15 = vector.load %arg3[%c1_19, %c0_20, %c0_21] : memref<4x48x32xf32, #tpu.memory_space<vmem>>, vector<1x48x32xf32>
    %16 = vector.shape_cast %15 : vector<1x48x32xf32> to vector<48x32xf32>
    %cst_22 = arith.constant dense<0.000000e+00> : vector<32x32xf32>
    %17 = tpu.matmul %11, %16, %cst_22 {dimension_numbers = #tpu.dot_dimension_numbers<[0], [0], [1], [1], [0, 1, 1, 1], [], []>} : vector<48x32xf32>, vector<48x32xf32>, vector<32x32xf32> -> vector<32x32xf32>
    %c0_23 = arith.constant 0 : index
    %c32 = arith.constant 32 : index
    %18 = vector.load %arg8[%c0_23, %c32] : memref<48x128xf32, #tpu.memory_space<vmem>>, vector<48x32xf32>
    tpu.vector_store %arg8[%c0_23, %c32], %14 {strides = array<i32>} : memref<48x128xf32, #tpu.memory_space<vmem>>, vector<48x32xf32>,
    %c0_24 = arith.constant 0 : index
    %c32_25 = arith.constant 32 : index
    %19 = vector.load %arg9[%c0_24, %c32_25] : memref<32x128xf32, #tpu.memory_space<vmem>>, vector<32x32xf32>
    tpu.vector_store %arg9[%c0_24, %c32_25], %17 {strides = array<i32>} : memref<32x128xf32, #tpu.memory_space<vmem>>, vector<32x32xf32>,
    %c2 = arith.constant 2 : index
    %c0_26 = arith.constant 0 : index
    %c0_27 = arith.constant 0 : index
    %20 = vector.load %arg1[%c2, %c0_26, %c0_27] : memref<4x48x32xf32, #tpu.memory_space<vmem>>, vector<1x48x32xf32>
    %21 = vector.shape_cast %20 : vector<1x48x32xf32> to vector<48x32xf32>
    %c2_28 = arith.constant 2 : index
    %c0_29 = arith.constant 0 : index
    %c0_30 = arith.constant 0 : index
    %22 = vector.load %arg2[%c2_28, %c0_29, %c0_30] : memref<4x32x32xf32, #tpu.memory_space<vmem>>, vector<1x32x32xf32>
    %23 = vector.shape_cast %22 : vector<1x32x32xf32> to vector<32x32xf32>
    %cst_31 = arith.constant dense<0.000000e+00> : vector<48x32xf32>
    %24 = tpu.matmul %21, %23, %cst_31 {dimension_numbers = #tpu.dot_dimension_numbers<[1], [0], [0], [1], [0, 0, 1, 1], [], []>} : vector<48x32xf32>, vector<32x32xf32>, vector<48x32xf32> -> vector<48x32xf32>
    %c2_32 = arith.constant 2 : index
    %c0_33 = arith.constant 0 : index
    %c0_34 = arith.constant 0 : index
    %25 = vector.load %arg3[%c2_32, %c0_33, %c0_34] : memref<4x48x32xf32, #tpu.memory_space<vmem>>, vector<1x48x32xf32>
    %26 = vector.shape_cast %25 : vector<1x48x32xf32> to vector<48x32xf32>
    %cst_35 = arith.constant dense<0.000000e+00> : vector<32x32xf32>
    %27 = tpu.matmul %21, %26, %cst_35 {dimension_numbers = #tpu.dot_dimension_numbers<[0], [0], [1], [1], [0, 1, 1, 1], [], []>} : vector<48x32xf32>, vector<48x32xf32>, vector<32x32xf32> -> vector<32x32xf32>
    %c0_36 = arith.constant 0 : index
    %c64 = arith.constant 64 : index
    %28 = vector.load %arg8[%c0_36, %c64] : memref<48x128xf32, #tpu.memory_space<vmem>>, vector<48x32xf32>
    tpu.vector_store %arg8[%c0_36, %c64], %24 {strides = array<i32>} : memref<48x128xf32, #tpu.memory_space<vmem>>, vector<48x32xf32>,
    %c0_37 = arith.constant 0 : index
    %c64_38 = arith.constant 64 : index
    %29 = vector.load %arg9[%c0_37, %c64_38] : memref<32x128xf32, #tpu.memory_space<vmem>>, vector<32x32xf32>
    tpu.vector_store %arg9[%c0_37, %c64_38], %27 {strides = array<i32>} : memref<32x128xf32, #tpu.memory_space<vmem>>, vector<32x32xf32>,
    %c3 = arith.constant 3 : index
    %c0_39 = arith.constant 0 : index
    %c0_40 = arith.constant 0 : index
    %30 = vector.load %arg1[%c3, %c0_39, %c0_40] : memref<4x48x32xf32, #tpu.memory_space<vmem>>, vector<1x48x32xf32>
    %31 = vector.shape_cast %30 : vector<1x48x32xf32> to vector<48x32xf32>
    %c3_41 = arith.constant 3 : index
    %c0_42 = arith.constant 0 : index
    %c0_43 = arith.constant 0 : index
    %32 = vector.load %arg2[%c3_41, %c0_42, %c0_43] : memref<4x32x32xf32, #tpu.memory_space<vmem>>, vector<1x32x32xf32>
    %33 = vector.shape_cast %32 : vector<1x32x32xf32> to vector<32x32xf32>
    %cst_44 = arith.constant dense<0.000000e+00> : vector<48x32xf32>
    %34 = tpu.matmul %31, %33, %cst_44 {dimension_numbers = #tpu.dot_dimension_numbers<[1], [0], [0], [1], [0, 0, 1, 1], [], []>} : vector<48x32xf32>, vector<32x32xf32>, vector<48x32xf32> -> vector<48x32xf32>
    %c3_45 = arith.constant 3 : index
    %c0_46 = arith.constant 0 : index
    %c0_47 = arith.constant 0 : index
    %35 = vector.load %arg3[%c3_45, %c0_46, %c0_47] : memref<4x48x32xf32, #tpu.memory_space<vmem>>, vector<1x48x32xf32>
    %36 = vector.shape_cast %35 : vector<1x48x32xf32> to vector<48x32xf32>
    %cst_48 = arith.constant dense<0.000000e+00> : vector<32x32xf32>
    %37 = tpu.matmul %31, %36, %cst_48 {dimension_numbers = #tpu.dot_dimension_numbers<[0], [0], [1], [1], [0, 1, 1, 1], [], []>} : vector<48x32xf32>, vector<48x32xf32>, vector<32x32xf32> -> vector<32x32xf32>
    %c0_49 = arith.constant 0 : index
    %c96 = arith.constant 96 : index
    %38 = vector.load %arg8[%c0_49, %c96] : memref<48x128xf32, #tpu.memory_space<vmem>>, vector<48x32xf32>
    tpu.vector_store %arg8[%c0_49, %c96], %34 {strides = array<i32>} : memref<48x128xf32, #tpu.memory_space<vmem>>, vector<48x32xf32>,
    %c0_50 = arith.constant 0 : index
    %c96_51 = arith.constant 96 : index
    %39 = vector.load %arg9[%c0_50, %c96_51] : memref<32x128xf32, #tpu.memory_space<vmem>>, vector<32x32xf32>
    tpu.vector_store %arg9[%c0_50, %c96_51], %37 {strides = array<i32>} : memref<32x128xf32, #tpu.memory_space<vmem>>, vector<32x32xf32>,
    %40 = arith.addf %4, %14 : vector<48x32xf32>
    %41 = arith.addf %7, %17 : vector<32x32xf32>
    %42 = arith.addf %40, %24 : vector<48x32xf32>
    %43 = arith.addf %41, %27 : vector<32x32xf32>
    %44 = arith.addf %42, %34 : vector<48x32xf32>
    %45 = arith.addf %43, %37 : vector<32x32xf32>
    %cst_52 = arith.constant 2.500000e-01 : f32
    %46 = vector.broadcast %cst_52 : f32 to vector<48x32xf32>
    %47 = arith.mulf %44, %46 : vector<48x32xf32>
    %cst_53 = arith.constant 2.500000e-01 : f32
    %48 = vector.broadcast %cst_53 : f32 to vector<32x32xf32>
    %49 = arith.mulf %45, %48 : vector<32x32xf32>
    %c0_54 = arith.constant 0 : index
    %c0_55 = arith.constant 0 : index
    %50 = vector.load %arg4[%c0_54, %c0_55] : memref<32x16xf32, #tpu.memory_space<vmem>>, vector<32x16xf32>
    %cst_56 = arith.constant dense<0.000000e+00> : vector<48x16xf32>
    %51 = tpu.matmul %47, %50, %cst_56 {dimension_numbers = #tpu.dot_dimension_numbers<[1], [0], [0], [1], [0, 0, 1, 1], [], []>} : vector<48x32xf32>, vector<32x16xf32>, vector<48x16xf32> -> vector<48x16xf32>
    %52 = arith.negf %51 : vector<48x16xf32>
    %53 = math.exp %52 : vector<48x16xf32>
    %cst_57 = arith.constant 1.000000e+00 : f32
    %54 = vector.broadcast %cst_57 : f32 to vector<48x16xf32>
    %55 = arith.addf %54, %53 : vector<48x16xf32>
    %56 = arith.divf %54, %55 : vector<48x16xf32>
    %c0_58 = arith.constant 0 : index
    %c0_59 = arith.constant 0 : index
    %57 = vector.load %arg6[%c0_58, %c0_59] : memref<48x16xf32, #tpu.memory_space<vmem>>, vector<48x16xf32>
    tpu.vector_store %arg6[%c0_58, %c0_59], %56 {strides = array<i32>} : memref<48x16xf32, #tpu.memory_space<vmem>>, vector<48x16xf32>,
    %c0_60 = arith.constant 0 : index
    %c0_61 = arith.constant 0 : index
    %58 = vector.load %arg5[%c0_60, %c0_61] : memref<32x16xf32, #tpu.memory_space<vmem>>, vector<32x16xf32>
    %cst_62 = arith.constant dense<0.000000e+00> : vector<32x16xf32>
    %59 = tpu.matmul %49, %58, %cst_62 {dimension_numbers = #tpu.dot_dimension_numbers<[1], [0], [0], [1], [0, 0, 1, 1], [], []>} : vector<32x32xf32>, vector<32x16xf32>, vector<32x16xf32> -> vector<32x16xf32>
    %60 = arith.negf %59 : vector<32x16xf32>
    %61 = math.exp %60 : vector<32x16xf32>
    %cst_63 = arith.constant 1.000000e+00 : f32
    %62 = vector.broadcast %cst_63 : f32 to vector<32x16xf32>
    %63 = arith.addf %62, %61 : vector<32x16xf32>
    %64 = arith.divf %62, %63 : vector<32x16xf32>
    %c0_64 = arith.constant 0 : index
    %c0_65 = arith.constant 0 : index
    %65 = vector.load %arg7[%c0_64, %c0_65] : memref<32x16xf32, #tpu.memory_space<vmem>>, vector<32x16xf32>
    tpu.vector_store %arg7[%c0_64, %c0_65], %64 {strides = array<i32>} : memref<32x16xf32, #tpu.memory_space<vmem>>, vector<32x16xf32>,
    %c0_66 = arith.constant 0 : index
    %c0_67 = arith.constant 0 : index
    %66 = vector.load %arg8[%c0_66, %c0_67] : memref<48x128xf32, #tpu.memory_space<vmem>>, vector<48x128xf32>
    %c0_68 = arith.constant 0 : index
    %c0_69 = arith.constant 0 : index
    %67 = vector.load %arg9[%c0_68, %c0_69] : memref<32x128xf32, #tpu.memory_space<vmem>>, vector<32x128xf32>
    %68 = arith.mulf %66, %66 : vector<48x128xf32>
    %cst_70 = arith.constant dense<0.000000e+00> : vector<128xf32>
    %69 = vector.multi_reduction <add>, %68, %cst_70 [0] : vector<48x128xf32> to vector<128xf32>
    %70 = vector.shape_cast %69 : vector<128xf32> to vector<1x128xf32>
    %71 = arith.mulf %67, %67 : vector<32x128xf32>
    %cst_71 = arith.constant dense<0.000000e+00> : vector<128xf32>
    %72 = vector.multi_reduction <add>, %71, %cst_71 [0] : vector<32x128xf32> to vector<128xf32>
    %73 = vector.shape_cast %72 : vector<128xf32> to vector<1x128xf32>
    %cst_72 = arith.constant 1.000000e-24 : f32
    %74 = vector.broadcast %cst_72 : f32 to vector<1x128xf32>
    %75 = arith.maximumf %70, %74 : vector<1x128xf32>
    %76 = math.rsqrt %75 : vector<1x128xf32>
    %77 = vector.broadcast %76 : vector<1x128xf32> to vector<48x128xf32>
    %78 = arith.mulf %66, %77 : vector<48x128xf32>
    %c0_73 = arith.constant 0 : index
    %c0_74 = arith.constant 0 : index
    %79 = vector.load %arg10[%c0_73, %c0_74] : memref<48x128xf32, #tpu.memory_space<vmem>>, vector<48x128xf32>
    tpu.vector_store %arg10[%c0_73, %c0_74], %78 {strides = array<i32>} : memref<48x128xf32, #tpu.memory_space<vmem>>, vector<48x128xf32>,
    %cst_75 = arith.constant 1.000000e-24 : f32
    %80 = vector.broadcast %cst_75 : f32 to vector<1x128xf32>
    %81 = arith.maximumf %73, %80 : vector<1x128xf32>
    %82 = math.rsqrt %81 : vector<1x128xf32>
    %83 = vector.broadcast %82 : vector<1x128xf32> to vector<32x128xf32>
    %84 = arith.mulf %67, %83 : vector<32x128xf32>
    %c0_76 = arith.constant 0 : index
    %c0_77 = arith.constant 0 : index
    %85 = vector.load %arg11[%c0_76, %c0_77] : memref<32x128xf32, #tpu.memory_space<vmem>>, vector<32x128xf32>
    tpu.vector_store %arg11[%c0_76, %c0_77], %84 {strides = array<i32>} : memref<32x128xf32, #tpu.memory_space<vmem>>, vector<32x128xf32>,
    return
  }
  func.func @transform_0(%arg0: i32) -> (i32, i32, i32) {
    %c0_i32 = arith.constant 0 : i32
    %c0_i32_0 = arith.constant 0 : i32
    %c0_i32_1 = arith.constant 0 : i32
    %c0_i32_2 = arith.constant 0 : i32
    return %c0_i32, %c0_i32_0, %c0_i32_1 : i32, i32, i32
  }
  func.func @transform_1(%arg0: i32) -> (i32, i32, i32) {
    %c0_i32 = arith.constant 0 : i32
    %c0_i32_0 = arith.constant 0 : i32
    %c0_i32_1 = arith.constant 0 : i32
    %c0_i32_2 = arith.constant 0 : i32
    return %c0_i32, %c0_i32_0, %c0_i32_1 : i32, i32, i32
  }
  func.func @transform_2(%arg0: i32) -> (i32, i32, i32) {
    %c0_i32 = arith.constant 0 : i32
    %c0_i32_0 = arith.constant 0 : i32
    %c0_i32_1 = arith.constant 0 : i32
    %c0_i32_2 = arith.constant 0 : i32
    return %c0_i32, %c0_i32_0, %c0_i32_1 : i32, i32, i32
  }
  func.func @transform_3(%arg0: i32) -> (i32, i32) {
    %c0_i32 = arith.constant 0 : i32
    %c0_i32_0 = arith.constant 0 : i32
    %c0_i32_1 = arith.constant 0 : i32
    return %c0_i32, %c0_i32_0 : i32, i32
  }
  func.func @transform_4(%arg0: i32) -> (i32, i32) {
    %c0_i32 = arith.constant 0 : i32
    %c0_i32_0 = arith.constant 0 : i32
    %c0_i32_1 = arith.constant 0 : i32
    return %c0_i32, %c0_i32_0 : i32, i32
  }
  func.func @transform_5(%arg0: i32) -> (i32, i32) {
    %c0_i32 = arith.constant 0 : i32
    %c0_i32_0 = arith.constant 0 : i32
    %c0_i32_1 = arith.constant 0 : i32
    return %c0_i32, %c0_i32_0 : i32, i32
  }
  func.func @transform_6(%arg0: i32) -> (i32, i32) {
    %c0_i32 = arith.constant 0 : i32
    %c0_i32_0 = arith.constant 0 : i32
    %c0_i32_1 = arith.constant 0 : i32
    return %c0_i32, %c0_i32_0 : i32, i32
  }
  func.func @transform_7(%arg0: i32) -> (i32, i32) {
    %c0_i32 = arith.constant 0 : i32
    %c0_i32_0 = arith.constant 0 : i32
    %c0_i32_1 = arith.constant 0 : i32
    return %c0_i32, %c0_i32_0 : i32, i32
  }
  func.func @transform_8(%arg0: i32) -> (i32, i32) {
    %c0_i32 = arith.constant 0 : i32
    %c0_i32_0 = arith.constant 0 : i32
    %c0_i32_1 = arith.constant 0 : i32
    return %c0_i32, %c0_i32_0 : i32, i32
  }
  func.func @transform_9(%arg0: i32) -> (i32, i32) {
    %c0_i32 = arith.constant 0 : i32
    %c0_i32_0 = arith.constant 0 : i32
    %c0_i32_1 = arith.constant 0 : i32
    return %c0_i32, %c0_i32_0 : i32, i32
  }
  func.func @transform_10(%arg0: i32) -> (i32, i32) {
    %c0_i32 = arith.constant 0 : i32
    %c0_i32_0 = arith.constant 0 : i32
    %c0_i32_1 = arith.constant 0 : i32
    return %c0_i32, %c0_i32_0 : i32, i32
  }
}

</mosaic_0001>

<llo_original>
// kernel: tpu_custom_call.1
$region0: #{tpu_custom_call.1}
  #allocation0 [shape = 'u32[]', space=smem, size = 0x4, offset = 0x4, fixed_abs, tag = 'smem constant byte address 0x4 - core index']
  #allocation1 [shape = 'u32[144,128]{1,0:T(1,128)}', space=vmem, size = 0x12000, scoped, tag = 'internal scratch']
  %s0 = inlined_call_operand.vmem [shape: f32[4,48,32], index: 0, kind: input, shape index: {}]
  %s1 = inlined_call_operand.vmem [shape: f32[4,32,32], index: 1, kind: input, shape index: {}]
  %s2 = inlined_call_operand.vmem [shape: f32[4,48,32], index: 2, kind: input, shape index: {}]
  %s3 = inlined_call_operand.vmem [shape: f32[32,16], index: 3, kind: input, shape index: {}]
  %s4 = inlined_call_operand.vmem [shape: f32[32,16], index: 4, kind: input, shape index: {}]
  %s5 = inlined_call_operand.vmem [shape: f32[48,16], index: 5, kind: output, shape index: {0}]
  %s6 = inlined_call_operand.vmem [shape: f32[32,16], index: 6, kind: output, shape index: {1}]
  %s7 = inlined_call_operand.hbm [shape: f32[48,128], index: 7, kind: output, shape index: {2}]
  %s8 = inlined_call_operand.hbm [shape: f32[32,128], index: 8, kind: output, shape index: {3}]
  %s9 = inlined_call_operand.hbm [shape: f32[48,128], index: 9, kind: output, shape index: {4}]
  %s10 = inlined_call_operand.hbm [shape: f32[32,128], index: 10, kind: output, shape index: {5}]
  %11 = xla_tuple %s5, %s6, %s7, %s8, %s9, %s10
  %s12 = sld [smem:[#allocation0]]
  $region70: #{tpu_custom_call.1} parent=0
    _
  %s14 = ssub.s32 1, %s12
  %s15 = scalar_select 0, %s14, %s12
  $region1: #{tpu_custom_call.1} parent=0
    #allocation2 [shape = 'u8[24576]{0}', space=vmem, size = 0x6000, scoped, tag = 'output window, operand 2, single buffered']
    #allocation3 [shape = 's32[1]{0}', space=sflag, size = 0x4, scoped, tag = 'scoped memory for tpu_custom_call.1']
    #allocation4 [shape = 'u8[16384]{0}', space=vmem, size = 0x4000, scoped, tag = 'output window, operand 3, single buffered']
    #allocation5 [shape = 's32[1]{0}', space=sflag, size = 0x4, scoped, tag = 'scoped memory for tpu_custom_call.1']
    #allocation6 [shape = 'u8[24576]{0}', space=vmem, size = 0x6000, scoped, tag = 'output window, operand 4, single buffered']
    #allocation7 [shape = 'u8[16384]{0}', space=vmem, size = 0x4000, scoped, tag = 'output window, operand 5, single buffered']
    #allocation8 [shape = 's32[1]{0}', space=sflag, size = 0x4, scoped, tag = 'scoped memory for tpu_custom_call.1']
    %16 = vsyncpa [#allocation3], 0
    %17 = vsyncpa [#allocation5], 0
    %18 = vsyncpa [#allocation8], 0
    // Predicated region
    $region2: #{tpu_custom_call.1} parent=1 // pred_check
      _
    $region3: #{tpu_custom_call.1} parent=1 // pred_check_branch
      %20 = sbr.rel (0) target = $region5
    $region4: #{tpu_custom_call.1} parent=1 // pred_region
      _
    $region5: #{tpu_custom_call.1} parent=1 // pred_fallthru
      _
    // Predicated region
    $region6: #{tpu_custom_call.1} parent=1 // pred_check
      _
    $region7: #{tpu_custom_call.1} parent=1 // pred_check_branch
      %22 = sbr.rel (0) target = $region9
    $region8: #{tpu_custom_call.1} parent=1 // pred_region
      _
    $region9: #{tpu_custom_call.1} parent=1 // pred_fallthru
      _
    // Predicated region
    $region10: #{tpu_custom_call.1} parent=1 // pred_check
      _
    $region11: #{tpu_custom_call.1} parent=1 // pred_check_branch
      %24 = sbr.rel (0) target = $region13
    $region12: #{tpu_custom_call.1} parent=1 // pred_region
      _
    $region13: #{tpu_custom_call.1} parent=1 // pred_fallthru
      _
    // Predicated region
    $region14: #{tpu_custom_call.1} parent=1 // pred_check
      _
    $region15: #{tpu_custom_call.1} parent=1 // pred_check_branch
      %26 = sbr.rel (0) target = $region17
    $region16: #{tpu_custom_call.1} parent=1 // pred_region
      _
    $region17: #{tpu_custom_call.1} parent=1 // pred_fallthru
      _
    // Predicated region
    $region18: #{tpu_custom_call.1} parent=1 // pred_check
      _
    $region19: #{tpu_custom_call.1} parent=1 // pred_check_branch
      %28 = sbr.rel (0) target = $region21
    $region20: #{tpu_custom_call.1} parent=1 // pred_region
      _
    $region21: #{tpu_custom_call.1} parent=1 // pred_fallthru
      _
    %v29 = vld [vmem:[%s0] sm:$0xff]
    %v30 = vld [vmem:[%s0 + $0x8] sm:$0xff]
    %v31 = vld [vmem:[%s0 + $0x10] sm:$0xff]
    %v32 = vld [vmem:[%s0 + $0x18] sm:$0xff]
    %v33 = vld [vmem:[%s0 + $0x20] sm:$0xff]
    %v34 = vld [vmem:[%s0 + $0x28] sm:$0xff]
    %v35 = vld [vmem:[%s1] sm:$0xff]
    %v36 = vld [vmem:[%s1 + $0x8] sm:$0xff]
    %v37 = vld [vmem:[%s1 + $0x10] sm:$0xff]
    %v38 = vld [vmem:[%s1 + $0x18] sm:$0xff]
    %vm39 = vcmask 261120
    %v41 = vsel %vm39, %v29, 0
    %v44 = vsel %vm39, %v30, 0
    %v47 = vsel %vm39, %v31, 0
    %v50 = vsel %vm39, %v32, 0
    %v53 = vsel %vm39, %v33, 0
    %v56 = vsel %vm39, %v34, 0
    %58 = vmatprep.subr.mxu0 0.0
    %59 = vmatpush1.msra.mxu0 %v35
    %60 = vmatprep.subr.mxu0 0.0
    %61 = vmatpush1.msra.mxu0 %v36
    %62 = vmatprep.subr.mxu0 0.0
    %63 = vmatpush1.msra.mxu0 %v37
    %64 = vmatprep.subr.mxu0 0.0
    %65 = vmatpush1.msra.mxu0 %v38
    %66 = vmatprep.subr.mxu0 0.0
    %67 = vmatpush1.msra.mxu0 0.0
    %68 = vmatprep.subr.mxu0 0.0
    %69 = vmatpush1.msra.mxu0 0.0
    %70 = vmatprep.subr.mxu0 0.0
    %71 = vmatpush1.msra.mxu0 0.0
    %72 = vmatprep.subr.mxu0 0.0
    %73 = vmatpush1.msra.mxu0 0.0
    %74 = vmatprep.subr.mxu0 0.0
    %75 = vmatpush1.msra.mxu0 0.0
    %76 = vmatprep.subr.mxu0 0.0
    %77 = vmatpush1.msra.mxu0 0.0
    %78 = vmatprep.subr.mxu0 0.0
    %79 = vmatpush1.msra.mxu0 0.0
    %80 = vmatprep.subr.mxu0 0.0
    %81 = vmatpush1.msra.mxu0 0.0
    %82 = vmatprep.subr.mxu0 0.0
    %83 = vmatpush1.msra.mxu0 0.0
    %84 = vmatprep.subr.mxu0 0.0
    %85 = vmatpush1.msra.mxu0 0.0
    %86 = vmatprep.subr.mxu0 0.0
    %87 = vmatpush1.msra.mxu0 0.0
    %88 = vmatprep.subr.mxu0 0.0
    %89 = vmatpush1.msra.mxu0 0.0
    %90 = vmatprep.subr.mxu0 0.0
    %91 = vmatpush1.msra.mxu0 0.0
    %92 = vmatprep.subr.mxu0 0.0
    %93 = vmatpush1.msra.mxu0 0.0
    %94 = vmatprep.subr.mxu0 0.0
    %95 = vmatpush1.msra.mxu0 0.0
    %96 = vmatprep.subr.mxu0 0.0
    %97 = vmatpush1.msra.mxu0 0.0
    %98 = vmatprep.subr.mxu0 0.0
    %99 = vmatpush1.msra.mxu0 0.0
    %100 = vmatprep.subr.mxu0 0.0
    %101 = vmatpush1.msra.mxu0 0.0
    %102 = vmatprep.subr.mxu0 0.0
    %103 = vmatpush1.msra.mxu0 0.0
    %104 = vmatprep.subr.mxu0 0.0
    %105 = vmatpush1.msra.mxu0 0.0
    %106 = vmatprep.subr.mxu0 0.0
    %107 = vmatpush1.msra.mxu0 0.0
    %108 = vmatprep.subr.mxu0 0.0
    %109 = vmatpush1.msra.mxu0 0.0
    %110 = vmatprep.subr.mxu0 0.0
    %111 = vmatpush1.msra.mxu0 0.0
    %112 = vmatprep.subr.mxu0 0.0
    %113 = vmatpush1.msra.mxu0 0.0
    %114 = vmatprep.subr.mxu0 0.0
    %115 = vmatpush1.msra.mxu0 0.0
    %116 = vmatprep.subr.mxu0 0.0
    %117 = vmatpush1.msra.mxu0 0.0
    %118 = vmatprep.subr.mxu0 0.0
    %119 = vmatpush1.msra.mxu0 0.0
    %120 = vmatprep.subr.mxu0 0.0
    %121 = vmatpush1.msra.mxu0 0.0
    %122 = vmatprep.mubr.f32.mxu0 0.0
    %123 = vmatmul.mubr.f32.gmra.mrb[0].mxu0 %v41
    %v124 = vpop.f32.mrb[0].mxu0
    %v125 = vadd.f32 0.0, %v124
    %v126 = vpop.f32.mrb[0].mxu0
    %127 = vmatprep.mubr.f32.mxu0 0.0
    %128 = vmatmul.mubr.f32.gmra.mrb[0].mxu0 %v44
    %v129 = vpop.f32.mrb[0].mxu0
    %v130 = vadd.f32 0.0, %v129
    %v131 = vpop.f32.mrb[0].mxu0
    %132 = vmatprep.mubr.f32.mxu0 0.0
    %133 = vmatmul.mubr.f32.gmra.mrb[0].mxu0 %v47
    %v134 = vpop.f32.mrb[0].mxu0
    %v135 = vadd.f32 0.0, %v134
    %v136 = vpop.f32.mrb[0].mxu0
    %137 = vmatprep.mubr.f32.mxu0 0.0
    %138 = vmatmul.mubr.f32.gmra.mrb[0].mxu0 %v50
    %v139 = vpop.f32.mrb[0].mxu0
    %v140 = vadd.f32 0.0, %v139
    %v141 = vpop.f32.mrb[0].mxu0
    %142 = vmatprep.mubr.f32.mxu0 0.0
    %143 = vmatmul.mubr.f32.gmra.mrb[0].mxu0 %v53
    %v144 = vpop.f32.mrb[0].mxu0
    %v145 = vadd.f32 0.0, %v144
    %v146 = vpop.f32.mrb[0].mxu0
    %147 = vmatprep.mubr.f32.mxu0 0.0
    %148 = vmatmul.mubr.f32.gmra.mrb[0].mxu0 %v56
    %v149 = vpop.f32.mrb[0].mxu0
    %v150 = vadd.f32 0.0, %v149
    %v151 = vpop.f32.mrb[0].mxu0
    %152 = vdwg.mxu0
    %v153 = vld [vmem:[%s2] sm:$0xff]
    %v154 = vld [vmem:[%s2 + $0x8] sm:$0xff]
    %v155 = vld [vmem:[%s2 + $0x10] sm:$0xff]
    %v156 = vld [vmem:[%s2 + $0x18] sm:$0xff]
    %v157 = vld [vmem:[%s2 + $0x20] sm:$0xff]
    %v158 = vld [vmem:[%s2 + $0x28] sm:$0xff]
    %159 = vxpose.xlu0.b32.start [1/16] %v29, 128
    %160 = vxpose.xlu0.b32.cont [2/16] %v30, 128
    %161 = vxpose.xlu0.b32.cont [3/16] %v31, 128
    %162 = vxpose.xlu0.b32.cont [4/16] %v32, 128
    %163 = vxpose.xlu0.b32.cont [5/16] %v33, 128
    %164 = vxpose.xlu0.b32.cont [6/16] %v34, 128
    %165 = vxpose.xlu0.b32.cont [7/16] 0.0, 128
    %166 = vxpose.xlu0.b32.cont [8/16] 0.0, 128
    %167 = vxpose.xlu0.b32.cont [9/16] 0.0, 128
    %168 = vxpose.xlu0.b32.cont [10/16] 0.0, 128
    %169 = vxpose.xlu0.b32.cont [11/16] 0.0, 128
    %170 = vxpose.xlu0.b32.cont [12/16] 0.0, 128
    %171 = vxpose.xlu0.b32.cont [13/16] 0.0, 128
    %172 = vxpose.xlu0.b32.cont [14/16] 0.0, 128
    %173 = vxpose.xlu0.b32.cont [15/16] 0.0, 128
    %174 = vxpose.xlu0.b32.end [16/16] 0.0, 128
    %v175 = vpop.trf.xlu0
    %v176 = vpop.trf.xlu0
    %v177 = vpop.trf.xlu0
    %v178 = vpop.trf.xlu0
    %v179 = vpop.trf.xlu0
    %v180 = vpop.trf.xlu0
    %v181 = vpop.trf.xlu0
    %v182 = vpop.trf.xlu0
    %v183 = vpop.trf.xlu0
    %v184 = vpop.trf.xlu0
    %v185 = vpop.trf.xlu0
    %v186 = vpop.trf.xlu0
    %v187 = vpop.trf.xlu0
    %v188 = vpop.trf.xlu0
    %v189 = vpop.trf.xlu0
    %v190 = vpop.trf.xlu0
    %vm191 = vcmask 392192
    %v193 = vsel %vm191, %v175, 0
    %v196 = vsel %vm191, %v176, 0
    %v199 = vsel %vm191, %v177, 0
    %v202 = vsel %vm191, %v178, 0
    %204 = vmatprep.subr.mxu0 0.0
    %205 = vmatpush1.msra.mxu0 %v153
    %206 = vmatprep.subr.mxu0 0.0
    %207 = vmatpush1.msra.mxu0 %v154
    %208 = vmatprep.subr.mxu0 0.0
    %209 = vmatpush1.msra.mxu0 %v155
    %210 = vmatprep.subr.mxu0 0.0
    %211 = vmatpush1.msra.mxu0 %v156
    %212 = vmatprep.subr.mxu0 0.0
    %213 = vmatpush1.msra.mxu0 %v157
    %214 = vmatprep.subr.mxu0 0.0
    %215 = vmatpush1.msra.mxu0 %v158
    %216 = vmatprep.subr.mxu0 0.0
    %217 = vmatpush1.msra.mxu0 0.0
    %218 = vmatprep.subr.mxu0 0.0
    %219 = vmatpush1.msra.mxu0 0.0
    %220 = vmatprep.subr.mxu0 0.0
    %221 = vmatpush1.msra.mxu0 0.0
    %222 = vmatprep.subr.mxu0 0.0
    %223 = vmatpush1.msra.mxu0 0.0
    %224 = vmatprep.subr.mxu0 0.0
    %225 = vmatpush1.msra.mxu0 0.0
    %226 = vmatprep.subr.mxu0 0.0
    %227 = vmatpush1.msra.mxu0 0.0
    %228 = vmatprep.subr.mxu0 0.0
    %229 = vmatpush1.msra.mxu0 0.0
    %230 = vmatprep.subr.mxu0 0.0
    %231 = vmatpush1.msra.mxu0 0.0
    %232 = vmatprep.subr.mxu0 0.0
    %233 = vmatpush1.msra.mxu0 0.0
    %234 = vmatprep.subr.mxu0 0.0
    %235 = vmatpush1.msra.mxu0 0.0
    %236 = vmatprep.subr.mxu0 0.0
    %237 = vmatpush1.msra.mxu0 0.0
    %238 = vmatprep.subr.mxu0 0.0
    %239 = vmatpush1.msra.mxu0 0.0
    %240 = vmatprep.subr.mxu0 0.0
    %241 = vmatpush1.msra.mxu0 0.0
    %242 = vmatprep.subr.mxu0 0.0
    %243 = vmatpush1.msra.mxu0 0.0
    %244 = vmatprep.subr.mxu0 0.0
    %245 = vmatpush1.msra.mxu0 0.0
    %246 = vmatprep.subr.mxu0 0.0
    %247 = vmatpush1.msra.mxu0 0.0
    %248 = vmatprep.subr.mxu0 0.0
    %249 = vmatpush1.msra.mxu0 0.0
    %250 = vmatprep.subr.mxu0 0.0
    %251 = vmatpush1.msra.mxu0 0.0
    %252 = vmatprep.subr.mxu0 0.0
    %253 = vmatpush1.msra.mxu0 0.0
    %254 = vmatprep.subr.mxu0 0.0
    %255 = vmatpush1.msra.mxu0 0.0
    %256 = vmatprep.subr.mxu0 0.0
    %257 = vmatpush1.msra.mxu0 0.0
    %258 = vmatprep.subr.mxu0 0.0
    %259 = vmatpush1.msra.mxu0 0.0
    %260 = vmatprep.subr.mxu0 0.0
    %261 = vmatpush1.msra.mxu0 0.0
    %262 = vmatprep.subr.mxu0 0.0
    %263 = vmatpush1.msra.mxu0 0.0
    %264 = vmatprep.subr.mxu0 0.0
    %265 = vmatpush1.msra.mxu0 0.0
    %266 = vmatprep.subr.mxu0 0.0
    %267 = vmatpush1.msra.mxu0 0.0
    %268 = vmatprep.mubr.f32.mxu0 0.0
    %269 = vmatmul.mubr.f32.gmra.mrb[0].mxu0 %v193
    %v270 = vpop.f32.mrb[0].mxu0
    %v271 = vadd.f32 0.0, %v270
    %v272 = vpop.f32.mrb[0].mxu0
    %273 = vmatprep.mubr.f32.mxu0 0.0
    %274 = vmatmul.mubr.f32.gmra.mrb[0].mxu0 %v196
    %v275 = vpop.f32.mrb[0].mxu0
    %v276 = vadd.f32 0.0, %v275
    %v277 = vpop.f32.mrb[0].mxu0
    %278 = vmatprep.mubr.f32.mxu0 0.0
    %279 = vmatmul.mubr.f32.gmra.mrb[0].mxu0 %v199
    %v280 = vpop.f32.mrb[0].mxu0
    %v281 = vadd.f32 0.0, %v280
    %v282 = vpop.f32.mrb[0].mxu0
    %283 = vmatprep.mubr.f32.mxu0 0.0
    %284 = vmatmul.mubr.f32.gmra.mrb[0].mxu0 %v202
    %v285 = vpop.f32.mrb[0].mxu0
    %v286 = vadd.f32 0.0, %v285
    %v287 = vpop.f32.mrb[0].mxu0
    %288 = vdwg.mxu0
    %289 = vst.msk [vmem:[#allocation2] sm:$0xff] %vm39, %v125
    %290 = vst.msk [vmem:[#allocation2 + $0x8] sm:$0xff] %vm39, %v130
    %291 = vst.msk [vmem:[#allocation2 + $0x10] sm:$0xff] %vm39, %v135
    %292 = vst.msk [vmem:[#allocation2 + $0x18] sm:$0xff] %vm39, %v140
    %293 = vst.msk [vmem:[#allocation2 + $0x20] sm:$0xff] %vm39, %v145
    %294 = vst.msk [vmem:[#allocation2 + $0x28] sm:$0xff] %vm39, %v150
    %295 = vst.msk [vmem:[#allocation4] sm:$0xff] %vm39, %v271
    %296 = vst.msk [vmem:[#allocation4 + $0x8] sm:$0xff] %vm39, %v276
    %297 = vst.msk [vmem:[#allocation4 + $0x10] sm:$0xff] %vm39, %v281
    %298 = vst.msk [vmem:[#allocation4 + $0x18] sm:$0xff] %vm39, %v286
    %s299 = scalar_lea.vmem %s0, 48
    %v300 = vld [vmem:[%s299] sm:$0xff]
    %v301 = vld [vmem:[%s299 + $0x8] sm:$0xff]
    %v302 = vld [vmem:[%s299 + $0x10] sm:$0xff]
    %v303 = vld [vmem:[%s299 + $0x18] sm:$0xff]
    %v304 = vld [vmem:[%s299 + $0x20] sm:$0xff]
    %v305 = vld [vmem:[%s299 + $0x28] sm:$0xff]
    %s306 = scalar_lea.vmem %s1, 32
    %v307 = vld [vmem:[%s306] sm:$0xff]
    %v308 = vld [vmem:[%s306 + $0x8] sm:$0xff]
    %v309 = vld [vmem:[%s306 + $0x10] sm:$0xff]
    %v310 = vld [vmem:[%s306 + $0x18] sm:$0xff]
    %v312 = vsel %vm39, %v300, 0
    %v315 = vsel %vm39, %v301, 0
    %v318 = vsel %vm39, %v302, 0
    %v321 = vsel %vm39, %v303, 0
    %v324 = vsel %vm39, %v304, 0
    %v327 = vsel %vm39, %v305, 0
    %329 = vmatprep.subr.mxu0 0.0
    %330 = vmatpush1.msra.mxu0 %v307
    %331 = vmatprep.subr.mxu0 0.0
    %332 = vmatpush1.msra.mxu0 %v308
    %333 = vmatprep.subr.mxu0 0.0
    %334 = vmatpush1.msra.mxu0 %v309
    %335 = vmatprep.subr.mxu0 0.0
    %336 = vmatpush1.msra.mxu0 %v310
    %337 = vmatprep.subr.mxu0 0.0
    %338 = vmatpush1.msra.mxu0 0.0
    %339 = vmatprep.subr.mxu0 0.0
    %340 = vmatpush1.msra.mxu0 0.0
    %341 = vmatprep.subr.mxu0 0.0
    %342 = vmatpush1.msra.mxu0 0.0
    %343 = vmatprep.subr.mxu0 0.0
    %344 = vmatpush1.msra.mxu0 0.0
    %345 = vmatprep.subr.mxu0 0.0
    %346 = vmatpush1.msra.mxu0 0.0
    %347 = vmatprep.subr.mxu0 0.0
    %348 = vmatpush1.msra.mxu0 0.0
    %349 = vmatprep.subr.mxu0 0.0
    %350 = vmatpush1.msra.mxu0 0.0
    %351 = vmatprep.subr.mxu0 0.0
    %352 = vmatpush1.msra.mxu0 0.0
    %353 = vmatprep.subr.mxu0 0.0
    %354 = vmatpush1.msra.mxu0 0.0
    %355 = vmatprep.subr.mxu0 0.0
    %356 = vmatpush1.msra.mxu0 0.0
    %357 = vmatprep.subr.mxu0 0.0
    %358 = vmatpush1.msra.mxu0 0.0
    %359 = vmatprep.subr.mxu0 0.0
    %360 = vmatpush1.msra.mxu0 0.0
    %361 = vmatprep.subr.mxu0 0.0
    %362 = vmatpush1.msra.mxu0 0.0
    %363 = vmatprep.subr.mxu0 0.0
    %364 = vmatpush1.msra.mxu0 0.0
    %365 = vmatprep.subr.mxu0 0.0
    %366 = vmatpush1.msra.mxu0 0.0
    %367 = vmatprep.subr.mxu0 0.0
    %368 = vmatpush1.msra.mxu0 0.0
    %369 = vmatprep.subr.mxu0 0.0
    %370 = vmatpush1.msra.mxu0 0.0
    %371 = vmatprep.subr.mxu0 0.0
    %372 = vmatpush1.msra.mxu0 0.0
    %373 = vmatprep.subr.mxu0 0.0
    %374 = vmatpush1.msra.mxu0 0.0
    %375 = vmatprep.subr.mxu0 0.0
    %376 = vmatpush1.msra.mxu0 0.0
    %377 = vmatprep.subr.mxu0 0.0
    %378 = vmatpush1.msra.mxu0 0.0
    %379 = vmatprep.subr.mxu0 0.0
    %380 = vmatpush1.msra.mxu0 0.0
    %381 = vmatprep.subr.mxu0 0.0
    %382 = vmatpush1.msra.mxu0 0.0
    %383 = vmatprep.subr.mxu0 0.0
    %384 = vmatpush1.msra.mxu0 0.0
    %385 = vmatprep.subr.mxu0 0.0
    %386 = vmatpush1.msra.mxu0 0.0
    %387 = vmatprep.subr.mxu0 0.0
    %388 = vmatpush1.msra.mxu0 0.0
    %389 = vmatprep.subr.mxu0 0.0
    %390 = vmatpush1.msra.mxu0 0.0
    %391 = vmatprep.subr.mxu0 0.0
    %392 = vmatpush1.msra.mxu0 0.0
    %393 = vmatprep.mubr.f32.mxu0 0.0
    %394 = vmatmul.mubr.f32.gmra.mrb[0].mxu0 %v312
    %v395 = vpop.f32.mrb[0].mxu0
    %v396 = vadd.f32 0.0, %v395
    %v397 = vpop.f32.mrb[0].mxu0
    %398 = vmatprep.mubr.f32.mxu0 0.0
    %399 = vmatmul.mubr.f32.gmra.mrb[0].mxu0 %v315
    %v400 = vpop.f32.mrb[0].mxu0
    %v401 = vadd.f32 0.0, %v400
    %v402 = vpop.f32.mrb[0].mxu0
    %403 = vmatprep.mubr.f32.mxu0 0.0
    %404 = vmatmul.mubr.f32.gmra.mrb[0].mxu0 %v318
    %v405 = vpop.f32.mrb[0].mxu0
    %v406 = vadd.f32 0.0, %v405
    %v407 = vpop.f32.mrb[0].mxu0
    %408 = vmatprep.mubr.f32.mxu0 0.0
    %409 = vmatmul.mubr.f32.gmra.mrb[0].mxu0 %v321
    %v410 = vpop.f32.mrb[0].mxu0
    %v411 = vadd.f32 0.0, %v410
    %v412 = vpop.f32.mrb[0].mxu0
    %413 = vmatprep.mubr.f32.mxu0 0.0
    %414 = vmatmul.mubr.f32.gmra.mrb[0].mxu0 %v324
    %v415 = vpop.f32.mrb[0].mxu0
    %v416 = vadd.f32 0.0, %v415
    %v417 = vpop.f32.mrb[0].mxu0
    %418 = vmatprep.mubr.f32.mxu0 0.0
    %419 = vmatmul.mubr.f32.gmra.mrb[0].mxu0 %v327
    %v420 = vpop.f32.mrb[0].mxu0
    %v421 = vadd.f32 0.0, %v420
    %v422 = vpop.f32.mrb[0].mxu0
    %423 = vdwg.mxu0
    %s424 = scalar_lea.vmem %s2, 48
    %v425 = vld [vmem:[%s424] sm:$0xff]
    %v426 = vld [vmem:[%s424 + $0x8] sm:$0xff]
    %v427 = vld [vmem:[%s424 + $0x10] sm:$0xff]
    %v428 = vld [vmem:[%s424 + $0x18] sm:$0xff]
    %v429 = vld [vmem:[%s424 + $0x20] sm:$0xff]
    %v430 = vld [vmem:[%s424 + $0x28] sm:$0xff]
    %431 = vxpose.xlu0.b32.start [1/16] %v300, 128
    %432 = vxpose.xlu0.b32.cont [2/16] %v301, 128
    %433 = vxpose.xlu0.b32.cont [3/16] %v302, 128
    %434 = vxpose.xlu0.b32.cont [4/16] %v303, 128
    %435 = vxpose.xlu0.b32.cont [5/16] %v304, 128
    %436 = vxpose.xlu0.b32.cont [6/16] %v305, 128
    %437 = vxpose.xlu0.b32.cont [7/16] 0.0, 128
    %438 = vxpose.xlu0.b32.cont [8/16] 0.0, 128
    %439 = vxpose.xlu0.b32.cont [9/16] 0.0, 128
    %440 = vxpose.xlu0.b32.cont [10/16] 0.0, 128
    %441 = vxpose.xlu0.b32.cont [11/16] 0.0, 128
    %442 = vxpose.xlu0.b32.cont [12/16] 0.0, 128
    %443 = vxpose.xlu0.b32.cont [13/16] 0.0, 128
    %444 = vxpose.xlu0.b32.cont [14/16] 0.0, 128
    %445 = vxpose.xlu0.b32.cont [15/16] 0.0, 128
    %446 = vxpose.xlu0.b32.end [16/16] 0.0, 128
    %v447 = vpop.trf.xlu0
    %v448 = vpop.trf.xlu0
    %v449 = vpop.trf.xlu0
    %v450 = vpop.trf.xlu0
    %v451 = vpop.trf.xlu0
    %v452 = vpop.trf.xlu0
    %v453 = vpop.trf.xlu0
    %v454 = vpop.trf.xlu0
    %v455 = vpop.trf.xlu0
    %v456 = vpop.trf.xlu0
    %v457 = vpop.trf.xlu0
    %v458 = vpop.trf.xlu0
    %v459 = vpop.trf.xlu0
    %v460 = vpop.trf.xlu0
    %v461 = vpop.trf.xlu0
    %v462 = vpop.trf.xlu0
    %v464 = vsel %vm191, %v447, 0
    %v467 = vsel %vm191, %v448, 0
    %v470 = vsel %vm191, %v449, 0
    %v473 = vsel %vm191, %v450, 0
    %475 = vmatprep.subr.mxu0 0.0
    %476 = vmatpush1.msra.mxu0 %v425
    %477 = vmatprep.subr.mxu0 0.0
    %478 = vmatpush1.msra.mxu0 %v426
    %479 = vmatprep.subr.mxu0 0.0
    %480 = vmatpush1.msra.mxu0 %v427
    %481 = vmatprep.subr.mxu0 0.0
    %482 = vmatpush1.msra.mxu0 %v428
    %483 = vmatprep.subr.mxu0 0.0
    %484 = vmatpush1.msra.mxu0 %v429
    %485 = vmatprep.subr.mxu0 0.0
    %486 = vmatpush1.msra.mxu0 %v430
    %487 = vmatprep.subr.mxu0 0.0
    %488 = vmatpush1.msra.mxu0 0.0
    %489 = vmatprep.subr.mxu0 0.0
    %490 = vmatpush1.msra.mxu0 0.0
    %491 = vmatprep.subr.mxu0 0.0
    %492 = vmatpush1.msra.mxu0 0.0
    %493 = vmatprep.subr.mxu0 0.0
    %494 = vmatpush1.msra.mxu0 0.0
    %495 = vmatprep.subr.mxu0 0.0
    %496 = vmatpush1.msra.mxu0 0.0
    %497 = vmatprep.subr.mxu0 0.0
    %498 = vmatpush1.msra.mxu0 0.0
    %499 = vmatprep.subr.mxu0 0.0
    %500 = vmatpush1.msra.mxu0 0.0
    %501 = vmatprep.subr.mxu0 0.0
    %502 = vmatpush1.msra.mxu0 0.0
    %503 = vmatprep.subr.mxu0 0.0
    %504 = vmatpush1.msra.mxu0 0.0
    %505 = vmatprep.subr.mxu0 0.0
    %506 = vmatpush1.msra.mxu0 0.0
    %507 = vmatprep.subr.mxu0 0.0
    %508 = vmatpush1.msra.mxu0 0.0
    %509 = vmatprep.subr.mxu0 0.0
    %510 = vmatpush1.msra.mxu0 0.0
    %511 = vmatprep.subr.mxu0 0.0
    %512 = vmatpush1.msra.mxu0 0.0
    %513 = vmatprep.subr.mxu0 0.0
    %514 = vmatpush1.msra.mxu0 0.0
    %515 = vmatprep.subr.mxu0 0.0
    %516 = vmatpush1.msra.mxu0 0.0
    %517 = vmatprep.subr.mxu0 0.0
    %518 = vmatpush1.msra.mxu0 0.0
    %519 = vmatprep.subr.mxu0 0.0
    %520 = vmatpush1.msra.mxu0 0.0
    %521 = vmatprep.subr.mxu0 0.0
    %522 = vmatpush1.msra.mxu0 0.0
    %523 = vmatprep.subr.mxu0 0.0
    %524 = vmatpush1.msra.mxu0 0.0
    %525 = vmatprep.subr.mxu0 0.0
    %526 = vmatpush1.msra.mxu0 0.0
    %527 = vmatprep.subr.mxu0 0.0
    %528 = vmatpush1.msra.mxu0 0.0
    %529 = vmatprep.subr.mxu0 0.0
    %530 = vmatpush1.msra.mxu0 0.0
    %531 = vmatprep.subr.mxu0 0.0
    %532 = vmatpush1.msra.mxu0 0.0
    %533 = vmatprep.subr.mxu0 0.0
    %534 = vmatpush1.msra.mxu0 0.0
    %535 = vmatprep.subr.mxu0 0.0
    %536 = vmatpush1.msra.mxu0 0.0
    %537 = vmatprep.subr.mxu0 0.0
    %538 = vmatpush1.msra.mxu0 0.0
    %539 = vmatprep.mubr.f32.mxu0 0.0
    %540 = vmatmul.mubr.f32.gmra.mrb[0].mxu0 %v464
    %v541 = vpop.f32.mrb[0].mxu0
    %v542 = vadd.f32 0.0, %v541
    %v543 = vpop.f32.mrb[0].mxu0
    %544 = vmatprep.mubr.f32.mxu0 0.0
    %545 = vmatmul.mubr.f32.gmra.mrb[0].mxu0 %v467
    %v546 = vpop.f32.mrb[0].mxu0
    %v547 = vadd.f32 0.0, %v546
    %v548 = vpop.f32.mrb[0].mxu0
    %549 = vmatprep.mubr.f32.mxu0 0.0
    %550 = vmatmul.mubr.f32.gmra.mrb[0].mxu0 %v470
    %v551 = vpop.f32.mrb[0].mxu0
    %v552 = vadd.f32 0.0, %v551
    %v553 = vpop.f32.mrb[0].mxu0
    %554 = vmatprep.mubr.f32.mxu0 0.0
    %555 = vmatmul.mubr.f32.gmra.mrb[0].mxu0 %v473
    %v556 = vpop.f32.mrb[0].mxu0
    %v557 = vadd.f32 0.0, %v556
    %v558 = vpop.f32.mrb[0].mxu0
    %559 = vdwg.mxu0
    %566 = vrot.lane.b32.xlu0 %v396, 32
    %v567 = vpop.permute.xlu0 %566
    %568 = vrot.lane.b32.xlu0 %v401, 32
    %v569 = vpop.permute.xlu0 %568
    %570 = vrot.lane.b32.xlu0 %v406, 32
    %v571 = vpop.permute.xlu0 %570
    %572 = vrot.lane.b32.xlu0 %v411, 32
    %v573 = vpop.permute.xlu0 %572
    %574 = vrot.lane.b32.xlu0 %v416, 32
    %v575 = vpop.permute.xlu0 %574
    %576 = vrot.lane.b32.xlu0 %v421, 32
    %v577 = vpop.permute.xlu0 %576
    %vm584 = vcmask 523520
    %585 = vst.msk [vmem:[#allocation2] sm:$0xff] %vm584, %v567
    %586 = vst.msk [vmem:[#allocation2 + $0x8] sm:$0xff] %vm584, %v569
    %587 = vst.msk [vmem:[#allocation2 + $0x10] sm:$0xff] %vm584, %v571
    %588 = vst.msk [vmem:[#allocation2 + $0x18] sm:$0xff] %vm584, %v573
    %589 = vst.msk [vmem:[#allocation2 + $0x20] sm:$0xff] %vm584, %v575
    %590 = vst.msk [vmem:[#allocation2 + $0x28] sm:$0xff] %vm584, %v577
    %595 = vrot.lane.b32.xlu0 %v542, 32
    %v596 = vpop.permute.xlu0 %595
    %597 = vrot.lane.b32.xlu0 %v547, 32
    %v598 = vpop.permute.xlu0 %597
    %599 = vrot.lane.b32.xlu0 %v552, 32
    %v600 = vpop.permute.xlu0 %599
    %601 = vrot.lane.b32.xlu0 %v557, 32
    %v602 = vpop.permute.xlu0 %601
    %607 = vst.msk [vmem:[#allocation4] sm:$0xff] %vm584, %v596
    %608 = vst.msk [vmem:[#allocation4 + $0x8] sm:$0xff] %vm584, %v598
    %609 = vst.msk [vmem:[#allocation4 + $0x10] sm:$0xff] %vm584, %v600
    %610 = vst.msk [vmem:[#allocation4 + $0x18] sm:$0xff] %vm584, %v602
    %s611 = scalar_lea.vmem %s0, 96
    %v612 = vld [vmem:[%s611] sm:$0xff]
    %v613 = vld [vmem:[%s611 + $0x8] sm:$0xff]
    %v614 = vld [vmem:[%s611 + $0x10] sm:$0xff]
    %v615 = vld [vmem:[%s611 + $0x18] sm:$0xff]
    %v616 = vld [vmem:[%s611 + $0x20] sm:$0xff]
    %v617 = vld [vmem:[%s611 + $0x28] sm:$0xff]
    %s618 = scalar_lea.vmem %s1, 64
    %v619 = vld [vmem:[%s618] sm:$0xff]
    %v620 = vld [vmem:[%s618 + $0x8] sm:$0xff]
    %v621 = vld [vmem:[%s618 + $0x10] sm:$0xff]
    %v622 = vld [vmem:[%s618 + $0x18] sm:$0xff]
    %v624 = vsel %vm39, %v612, 0
    %v627 = vsel %vm39, %v613, 0
    %v630 = vsel %vm39, %v614, 0
    %v633 = vsel %vm39, %v615, 0
    %v636 = vsel %vm39, %v616, 0
    %v639 = vsel %vm39, %v617, 0
    %641 = vmatprep.subr.mxu0 0.0
    %642 = vmatpush1.msra.mxu0 %v619
    %643 = vmatprep.subr.mxu0 0.0
    %644 = vmatpush1.msra.mxu0 %v620
    %645 = vmatprep.subr.mxu0 0.0
    %646 = vmatpush1.msra.mxu0 %v621
    %647 = vmatprep.subr.mxu0 0.0
    %648 = vmatpush1.msra.mxu0 %v622
    %649 = vmatprep.subr.mxu0 0.0
    %650 = vmatpush1.msra.mxu0 0.0
    %651 = vmatprep.subr.mxu0 0.0
    %652 = vmatpush1.msra.mxu0 0.0
    %653 = vmatprep.subr.mxu0 0.0
    %654 = vmatpush1.msra.mxu0 0.0
    %655 = vmatprep.subr.mxu0 0.0
    %656 = vmatpush1.msra.mxu0 0.0
    %657 = vmatprep.subr.mxu0 0.0
    %658 = vmatpush1.msra.mxu0 0.0
    %659 = vmatprep.subr.mxu0 0.0
    %660 = vmatpush1.msra.mxu0 0.0
    %661 = vmatprep.subr.mxu0 0.0
    %662 = vmatpush1.msra.mxu0 0.0
    %663 = vmatprep.subr.mxu0 0.0
    %664 = vmatpush1.msra.mxu0 0.0
    %665 = vmatprep.subr.mxu0 0.0
    %666 = vmatpush1.msra.mxu0 0.0
    %667 = vmatprep.subr.mxu0 0.0
    %668 = vmatpush1.msra.mxu0 0.0
    %669 = vmatprep.subr.mxu0 0.0
    %670 = vmatpush1.msra.mxu0 0.0
    %671 = vmatprep.subr.mxu0 0.0
    %672 = vmatpush1.msra.mxu0 0.0
    %673 = vmatprep.subr.mxu0 0.0
    %674 = vmatpush1.msra.mxu0 0.0
    %675 = vmatprep.subr.mxu0 0.0
    %676 = vmatpush1.msra.mxu0 0.0
    %677 = vmatprep.subr.mxu0 0.0
    %678 = vmatpush1.msra.mxu0 0.0
    %679 = vmatprep.subr.mxu0 0.0
    %680 = vmatpush1.msra.mxu0 0.0
    %681 = vmatprep.subr.mxu0 0.0
    %682 = vmatpush1.msra.mxu0 0.0
    %683 = vmatprep.subr.mxu0 0.0
    %684 = vmatpush1.msra.mxu0 0.0
    %685 = vmatprep.subr.mxu0 0.0
    %686 = vmatpush1.msra.mxu0 0.0
    %687 = vmatprep.subr.mxu0 0.0
    %688 = vmatpush1.msra.mxu0 0.0
    %689 = vmatprep.subr.mxu0 0.0
    %690 = vmatpush1.msra.mxu0 0.0
    %691 = vmatprep.subr.mxu0 0.0
    %692 = vmatpush1.msra.mxu0 0.0
    %693 = vmatprep.subr.mxu0 0.0
    %694 = vmatpush1.msra.mxu0 0.0
    %695 = vmatprep.subr.mxu0 0.0
    %696 = vmatpush1.msra.mxu0 0.0
    %697 = vmatprep.subr.mxu0 0.0
    %698 = vmatpush1.msra.mxu0 0.0
    %699 = vmatprep.subr.mxu0 0.0
    %700 = vmatpush1.msra.mxu0 0.0
    %701 = vmatprep.subr.mxu0 0.0
    %702 = vmatpush1.msra.mxu0 0.0
    %703 = vmatprep.subr.mxu0 0.0
    %704 = vmatpush1.msra.mxu0 0.0
    %705 = vmatprep.mubr.f32.mxu0 0.0
    %706 = vmatmul.mubr.f32.gmra.mrb[0].mxu0 %v624
    %v707 = vpop.f32.mrb[0].mxu0
    %v708 = vadd.f32 0.0, %v707
    %v709 = vpop.f32.mrb[0].mxu0
    %710 = vmatprep.mubr.f32.mxu0 0.0
    %711 = vmatmul.mubr.f32.gmra.mrb[0].mxu0 %v627
    %v712 = vpop.f32.mrb[0].mxu0
    %v713 = vadd.f32 0.0, %v712
    %v714 = vpop.f32.mrb[0].mxu0
    %715 = vmatprep.mubr.f32.mxu0 0.0
    %716 = vmatmul.mubr.f32.gmra.mrb[0].mxu0 %v630
    %v717 = vpop.f32.mrb[0].mxu0
    %v718 = vadd.f32 0.0, %v717
    %v719 = vpop.f32.mrb[0].mxu0
    %720 = vmatprep.mubr.f32.mxu0 0.0
    %721 = vmatmul.mubr.f32.gmra.mrb[0].mxu0 %v633
    %v722 = vpop.f32.mrb[0].mxu0
    %v723 = vadd.f32 0.0, %v722
    %v724 = vpop.f32.mrb[0].mxu0
    %725 = vmatprep.mubr.f32.mxu0 0.0
    %726 = vmatmul.mubr.f32.gmra.mrb[0].mxu0 %v636
    %v727 = vpop.f32.mrb[0].mxu0
    %v728 = vadd.f32 0.0, %v727
    %v729 = vpop.f32.mrb[0].mxu0
    %730 = vmatprep.mubr.f32.mxu0 0.0
    %731 = vmatmul.mubr.f32.gmra.mrb[0].mxu0 %v639
    %v732 = vpop.f32.mrb[0].mxu0
    %v733 = vadd.f32 0.0, %v732
    %v734 = vpop.f32.mrb[0].mxu0
    %735 = vdwg.mxu0
    %s736 = scalar_lea.vmem %s2, 96
    %v737 = vld [vmem:[%s736] sm:$0xff]
    %v738 = vld [vmem:[%s736 + $0x8] sm:$0xff]
    %v739 = vld [vmem:[%s736 + $0x10] sm:$0xff]
    %v740 = vld [vmem:[%s736 + $0x18] sm:$0xff]
    %v741 = vld [vmem:[%s736 + $0x20] sm:$0xff]
    %v742 = vld [vmem:[%s736 + $0x28] sm:$0xff]
    %743 = vxpose.xlu0.b32.start [1/16] %v612, 128
    %744 = vxpose.xlu0.b32.cont [2/16] %v613, 128
    %745 = vxpose.xlu0.b32.cont [3/16] %v614, 128
    %746 = vxpose.xlu0.b32.cont [4/16] %v615, 128
    %747 = vxpose.xlu0.b32.cont [5/16] %v616, 128
    %748 = vxpose.xlu0.b32.cont [6/16] %v617, 128
    %749 = vxpose.xlu0.b32.cont [7/16] 0.0, 128
    %750 = vxpose.xlu0.b32.cont [8/16] 0.0, 128
    %751 = vxpose.xlu0.b32.cont [9/16] 0.0, 128
    %752 = vxpose.xlu0.b32.cont [10/16] 0.0, 128
    %753 = vxpose.xlu0.b32.cont [11/16] 0.0, 128
    %754 = vxpose.xlu0.b32.cont [12/16] 0.0, 128
    %755 = vxpose.xlu0.b32.cont [13/16] 0.0, 128
    %756 = vxpose.xlu0.b32.cont [14/16] 0.0, 128
    %757 = vxpose.xlu0.b32.cont [15/16] 0.0, 128
    %758 = vxpose.xlu0.b32.end [16/16] 0.0, 128
    %v759 = vpop.trf.xlu0
    %v760 = vpop.trf.xlu0
    %v761 = vpop.trf.xlu0
    %v762 = vpop.trf.xlu0
    %v763 = vpop.trf.xlu0
    %v764 = vpop.trf.xlu0
    %v765 = vpop.trf.xlu0
    %v766 = vpop.trf.xlu0
    %v767 = vpop.trf.xlu0
    %v768 = vpop.trf.xlu0
    %v769 = vpop.trf.xlu0
    %v770 = vpop.trf.xlu0
    %v771 = vpop.trf.xlu0
    %v772 = vpop.trf.xlu0
    %v773 = vpop.trf.xlu0
    %v774 = vpop.trf.xlu0
    %v776 = vsel %vm191, %v759, 0
    %v779 = vsel %vm191, %v760, 0
    %v782 = vsel %vm191, %v761, 0
    %v785 = vsel %vm191, %v762, 0
    %787 = vmatprep.subr.mxu0 0.0
    %788 = vmatpush1.msra.mxu0 %v737
    %789 = vmatprep.subr.mxu0 0.0
    %790 = vmatpush1.msra.mxu0 %v738
    %791 = vmatprep.subr.mxu0 0.0
    %792 = vmatpush1.msra.mxu0 %v739
    %793 = vmatprep.subr.mxu0 0.0
    %794 = vmatpush1.msra.mxu0 %v740
    %795 = vmatprep.subr.mxu0 0.0
    %796 = vmatpush1.msra.mxu0 %v741
    %797 = vmatprep.subr.mxu0 0.0
    %798 = vmatpush1.msra.mxu0 %v742
    %799 = vmatprep.subr.mxu0 0.0
    %800 = vmatpush1.msra.mxu0 0.0
    %801 = vmatprep.subr.mxu0 0.0
    %802 = vmatpush1.msra.mxu0 0.0
    %803 = vmatprep.subr.mxu0 0.0
    %804 = vmatpush1.msra.mxu0 0.0
    %805 = vmatprep.subr.mxu0 0.0
    %806 = vmatpush1.msra.mxu0 0.0
    %807 = vmatprep.subr.mxu0 0.0
    %808 = vmatpush1.msra.mxu0 0.0
    %809 = vmatprep.subr.mxu0 0.0
    %810 = vmatpush1.msra.mxu0 0.0
    %811 = vmatprep.subr.mxu0 0.0
    %812 = vmatpush1.msra.mxu0 0.0
    %813 = vmatprep.subr.mxu0 0.0
    %814 = vmatpush1.msra.mxu0 0.0
    %815 = vmatprep.subr.mxu0 0.0
    %816 = vmatpush1.msra.mxu0 0.0
    %817 = vmatprep.subr.mxu0 0.0
    %818 = vmatpush1.msra.mxu0 0.0
    %819 = vmatprep.subr.mxu0 0.0
    %820 = vmatpush1.msra.mxu0 0.0
    %821 = vmatprep.subr.mxu0 0.0
    %822 = vmatpush1.msra.mxu0 0.0
    %823 = vmatprep.subr.mxu0 0.0
    %824 = vmatpush1.msra.mxu0 0.0
    %825 = vmatprep.subr.mxu0 0.0
    %826 = vmatpush1.msra.mxu0 0.0
    %827 = vmatprep.subr.mxu0 0.0
    %828 = vmatpush1.msra.mxu0 0.0
    %829 = vmatprep.subr.mxu0 0.0
    %830 = vmatpush1.msra.mxu0 0.0
    %831 = vmatprep.subr.mxu0 0.0
    %832 = vmatpush1.msra.mxu0 0.0
    %833 = vmatprep.subr.mxu0 0.0
    %834 = vmatpush1.msra.mxu0 0.0
    %835 = vmatprep.subr.mxu0 0.0
    %836 = vmatpush1.msra.mxu0 0.0
    %837 = vmatprep.subr.mxu0 0.0
    %838 = vmatpush1.msra.mxu0 0.0
    %839 = vmatprep.subr.mxu0 0.0
    %840 = vmatpush1.msra.mxu0 0.0
    %841 = vmatprep.subr.mxu0 0.0
    %842 = vmatpush1.msra.mxu0 0.0
    %843 = vmatprep.subr.mxu0 0.0
    %844 = vmatpush1.msra.mxu0 0.0
    %845 = vmatprep.subr.mxu0 0.0
    %846 = vmatpush1.msra.mxu0 0.0
    %847 = vmatprep.subr.mxu0 0.0
    %848 = vmatpush1.msra.mxu0 0.0
    %849 = vmatprep.subr.mxu0 0.0
    %850 = vmatpush1.msra.mxu0 0.0
    %851 = vmatprep.mubr.f32.mxu0 0.0
    %852 = vmatmul.mubr.f32.gmra.mrb[0].mxu0 %v776
    %v853 = vpop.f32.mrb[0].mxu0
    %v854 = vadd.f32 0.0, %v853
    %v855 = vpop.f32.mrb[0].mxu0
    %856 = vmatprep.mubr.f32.mxu0 0.0
    %857 = vmatmul.mubr.f32.gmra.mrb[0].mxu0 %v779
    %v858 = vpop.f32.mrb[0].mxu0
    %v859 = vadd.f32 0.0, %v858
    %v860 = vpop.f32.mrb[0].mxu0
    %861 = vmatprep.mubr.f32.mxu0 0.0
    %862 = vmatmul.mubr.f32.gmra.mrb[0].mxu0 %v782
    %v863 = vpop.f32.mrb[0].mxu0
    %v864 = vadd.f32 0.0, %v863
    %v865 = vpop.f32.mrb[0].mxu0
    %866 = vmatprep.mubr.f32.mxu0 0.0
    %867 = vmatmul.mubr.f32.gmra.mrb[0].mxu0 %v785
    %v868 = vpop.f32.mrb[0].mxu0
    %v869 = vadd.f32 0.0, %v868
    %v870 = vpop.f32.mrb[0].mxu0
    %871 = vdwg.mxu0
    %878 = vrot.lane.b32.xlu0 %v708, 64
    %v879 = vpop.permute.xlu0 %878
    %880 = vrot.lane.b32.xlu0 %v713, 64
    %v881 = vpop.permute.xlu0 %880
    %882 = vrot.lane.b32.xlu0 %v718, 64
    %v883 = vpop.permute.xlu0 %882
    %884 = vrot.lane.b32.xlu0 %v723, 64
    %v885 = vpop.permute.xlu0 %884
    %886 = vrot.lane.b32.xlu0 %v728, 64
    %v887 = vpop.permute.xlu0 %886
    %888 = vrot.lane.b32.xlu0 %v733, 64
    %v889 = vpop.permute.xlu0 %888
    %vm896 = vcmask 785920
    %897 = vst.msk [vmem:[#allocation2] sm:$0xff] %vm896, %v879
    %898 = vst.msk [vmem:[#allocation2 + $0x8] sm:$0xff] %vm896, %v881
    %899 = vst.msk [vmem:[#allocation2 + $0x10] sm:$0xff] %vm896, %v883
    %900 = vst.msk [vmem:[#allocation2 + $0x18] sm:$0xff] %vm896, %v885
    %901 = vst.msk [vmem:[#allocation2 + $0x20] sm:$0xff] %vm896, %v887
    %902 = vst.msk [vmem:[#allocation2 + $0x28] sm:$0xff] %vm896, %v889
    %907 = vrot.lane.b32.xlu0 %v854, 64
    %v908 = vpop.permute.xlu0 %907
    %909 = vrot.lane.b32.xlu0 %v859, 64
    %v910 = vpop.permute.xlu0 %909
    %911 = vrot.lane.b32.xlu0 %v864, 64
    %v912 = vpop.permute.xlu0 %911
    %913 = vrot.lane.b32.xlu0 %v869, 64
    %v914 = vpop.permute.xlu0 %913
    %919 = vst.msk [vmem:[#allocation4] sm:$0xff] %vm896, %v908
    %920 = vst.msk [vmem:[#allocation4 + $0x8] sm:$0xff] %vm896, %v910
    %921 = vst.msk [vmem:[#allocation4 + $0x10] sm:$0xff] %vm896, %v912
    %922 = vst.msk [vmem:[#allocation4 + $0x18] sm:$0xff] %vm896, %v914
    %s923 = scalar_lea.vmem %s0, 144
    %v924 = vld [vmem:[%s923] sm:$0xff]
    %v925 = vld [vmem:[%s923 + $0x8] sm:$0xff]
    %v926 = vld [vmem:[%s923 + $0x10] sm:$0xff]
    %v927 = vld [vmem:[%s923 + $0x18] sm:$0xff]
    %v928 = vld [vmem:[%s923 + $0x20] sm:$0xff]
    %v929 = vld [vmem:[%s923 + $0x28] sm:$0xff]
    %s930 = scalar_lea.vmem %s1, 96
    %v931 = vld [vmem:[%s930] sm:$0xff]
    %v932 = vld [vmem:[%s930 + $0x8] sm:$0xff]
    %v933 = vld [vmem:[%s930 + $0x10] sm:$0xff]
    %v934 = vld [vmem:[%s930 + $0x18] sm:$0xff]
    %v936 = vsel %vm39, %v924, 0
    %v939 = vsel %vm39, %v925, 0
    %v942 = vsel %vm39, %v926, 0
    %v945 = vsel %vm39, %v927, 0
    %v948 = vsel %vm39, %v928, 0
    %v951 = vsel %vm39, %v929, 0
    %953 = vmatprep.subr.mxu0 0.0
    %954 = vmatpush1.msra.mxu0 %v931
    %955 = vmatprep.subr.mxu0 0.0
    %956 = vmatpush1.msra.mxu0 %v932
    %957 = vmatprep.subr.mxu0 0.0
    %958 = vmatpush1.msra.mxu0 %v933
    %959 = vmatprep.subr.mxu0 0.0
    %960 = vmatpush1.msra.mxu0 %v934
    %961 = vmatprep.subr.mxu0 0.0
    %962 = vmatpush1.msra.mxu0 0.0
    %963 = vmatprep.subr.mxu0 0.0
    %964 = vmatpush1.msra.mxu0 0.0
    %965 = vmatprep.subr.mxu0 0.0
    %966 = vmatpush1.msra.mxu0 0.0
    %967 = vmatprep.subr.mxu0 0.0
    %968 = vmatpush1.msra.mxu0 0.0
    %969 = vmatprep.subr.mxu0 0.0
    %970 = vmatpush1.msra.mxu0 0.0
    %971 = vmatprep.subr.mxu0 0.0
    %972 = vmatpush1.msra.mxu0 0.0
    %973 = vmatprep.subr.mxu0 0.0
    %974 = vmatpush1.msra.mxu0 0.0
    %975 = vmatprep.subr.mxu0 0.0
    %976 = vmatpush1.msra.mxu0 0.0
    %977 = vmatprep.subr.mxu0 0.0
    %978 = vmatpush1.msra.mxu0 0.0
    %979 = vmatprep.subr.mxu0 0.0
    %980 = vmatpush1.msra.mxu0 0.0
    %981 = vmatprep.subr.mxu0 0.0
    %982 = vmatpush1.msra.mxu0 0.0
    %983 = vmatprep.subr.mxu0 0.0
    %984 = vmatpush1.msra.mxu0 0.0
    %985 = vmatprep.subr.mxu0 0.0
    %986 = vmatpush1.msra.mxu0 0.0
    %987 = vmatprep.subr.mxu0 0.0
    %988 = vmatpush1.msra.mxu0 0.0
    %989 = vmatprep.subr.mxu0 0.0
    %990 = vmatpush1.msra.mxu0 0.0
    %991 = vmatprep.subr.mxu0 0.0
    %992 = vmatpush1.msra.mxu0 0.0
    %993 = vmatprep.subr.mxu0 0.0
    %994 = vmatpush1.msra.mxu0 0.0
    %995 = vmatprep.subr.mxu0 0.0
    %996 = vmatpush1.msra.mxu0 0.0
    %997 = vmatprep.subr.mxu0 0.0
    %998 = vmatpush1.msra.mxu0 0.0
    %999 = vmatprep.subr.mxu0 0.0
    %1000 = vmatpush1.msra.mxu0 0.0
    %1001 = vmatprep.subr.mxu0 0.0
    %1002 = vmatpush1.msra.mxu0 0.0
    %1003 = vmatprep.subr.mxu0 0.0
    %1004 = vmatpush1.msra.mxu0 0.0
    %1005 = vmatprep.subr.mxu0 0.0
    %1006 = vmatpush1.msra.mxu0 0.0
    %1007 = vmatprep.subr.mxu0 0.0
    %1008 = vmatpush1.msra.mxu0 0.0
    %1009 = vmatprep.subr.mxu0 0.0
    %1010 = vmatpush1.msra.mxu0 0.0
    %1011 = vmatprep.subr.mxu0 0.0
    %1012 = vmatpush1.msra.mxu0 0.0
    %1013 = vmatprep.subr.mxu0 0.0
    %1014 = vmatpush1.msra.mxu0 0.0
    %1015 = vmatprep.subr.mxu0 0.0
    %1016 = vmatpush1.msra.mxu0 0.0
    %1017 = vmatprep.mubr.f32.mxu0 0.0
    %1018 = vmatmul.mubr.f32.gmra.mrb[0].mxu0 %v936
    %v1019 = vpop.f32.mrb[0].mxu0
    %v1020 = vadd.f32 0.0, %v1019
    %v1021 = vpop.f32.mrb[0].mxu0
    %1022 = vmatprep.mubr.f32.mxu0 0.0
    %1023 = vmatmul.mubr.f32.gmra.mrb[0].mxu0 %v939
    %v1024 = vpop.f32.mrb[0].mxu0
    %v1025 = vadd.f32 0.0, %v1024
    %v1026 = vpop.f32.mrb[0].mxu0
    %1027 = vmatprep.mubr.f32.mxu0 0.0
    %1028 = vmatmul.mubr.f32.gmra.mrb[0].mxu0 %v942
    %v1029 = vpop.f32.mrb[0].mxu0
    %v1030 = vadd.f32 0.0, %v1029
    %v1031 = vpop.f32.mrb[0].mxu0
    %1032 = vmatprep.mubr.f32.mxu0 0.0
    %1033 = vmatmul.mubr.f32.gmra.mrb[0].mxu0 %v945
    %v1034 = vpop.f32.mrb[0].mxu0
    %v1035 = vadd.f32 0.0, %v1034
    %v1036 = vpop.f32.mrb[0].mxu0
    %1037 = vmatprep.mubr.f32.mxu0 0.0
    %1038 = vmatmul.mubr.f32.gmra.mrb[0].mxu0 %v948
    %v1039 = vpop.f32.mrb[0].mxu0
    %v1040 = vadd.f32 0.0, %v1039
    %v1041 = vpop.f32.mrb[0].mxu0
    %1042 = vmatprep.mubr.f32.mxu0 0.0
    %1043 = vmatmul.mubr.f32.gmra.mrb[0].mxu0 %v951
    %v1044 = vpop.f32.mrb[0].mxu0
    %v1045 = vadd.f32 0.0, %v1044
    %v1046 = vpop.f32.mrb[0].mxu0
    %1047 = vdwg.mxu0
    %s1048 = scalar_lea.vmem %s2, 144
    %v1049 = vld [vmem:[%s1048] sm:$0xff]
    %v1050 = vld [vmem:[%s1048 + $0x8] sm:$0xff]
    %v1051 = vld [vmem:[%s1048 + $0x10] sm:$0xff]
    %v1052 = vld [vmem:[%s1048 + $0x18] sm:$0xff]
    %v1053 = vld [vmem:[%s1048 + $0x20] sm:$0xff]
    %v1054 = vld [vmem:[%s1048 + $0x28] sm:$0xff]
    %1055 = vxpose.xlu0.b32.start [1/16] %v924, 128
    %1056 = vxpose.xlu0.b32.cont [2/16] %v925, 128
    %1057 = vxpose.xlu0.b32.cont [3/16] %v926, 128
    %1058 = vxpose.xlu0.b32.cont [4/16] %v927, 128
    %1059 = vxpose.xlu0.b32.cont [5/16] %v928, 128
    %1060 = vxpose.xlu0.b32.cont [6/16] %v929, 128
    %1061 = vxpose.xlu0.b32.cont [7/16] 0.0, 128
    %1062 = vxpose.xlu0.b32.cont [8/16] 0.0, 128
    %1063 = vxpose.xlu0.b32.cont [9/16] 0.0, 128
    %1064 = vxpose.xlu0.b32.cont [10/16] 0.0, 128
    %1065 = vxpose.xlu0.b32.cont [11/16] 0.0, 128
    %1066 = vxpose.xlu0.b32.cont [12/16] 0.0, 128
    %1067 = vxpose.xlu0.b32.cont [13/16] 0.0, 128
    %1068 = vxpose.xlu0.b32.cont [14/16] 0.0, 128
    %1069 = vxpose.xlu0.b32.cont [15/16] 0.0, 128
    %1070 = vxpose.xlu0.b32.end [16/16] 0.0, 128
    %v1071 = vpop.trf.xlu0
    %v1072 = vpop.trf.xlu0
    %v1073 = vpop.trf.xlu0
    %v1074 = vpop.trf.xlu0
    %v1075 = vpop.trf.xlu0
    %v1076 = vpop.trf.xlu0
    %v1077 = vpop.trf.xlu0
    %v1078 = vpop.trf.xlu0
    %v1079 = vpop.trf.xlu0
    %v1080 = vpop.trf.xlu0
    %v1081 = vpop.trf.xlu0
    %v1082 = vpop.trf.xlu0
    %v1083 = vpop.trf.xlu0
    %v1084 = vpop.trf.xlu0
    %v1085 = vpop.trf.xlu0
    %v1086 = vpop.trf.xlu0
    %v1088 = vsel %vm191, %v1071, 0
    %v1091 = vsel %vm191, %v1072, 0
    %v1094 = vsel %vm191, %v1073, 0
    %v1097 = vsel %vm191, %v1074, 0
    %1099 = vmatprep.subr.mxu0 0.0
    %1100 = vmatpush1.msra.mxu0 %v1049
    %1101 = vmatprep.subr.mxu0 0.0
    %1102 = vmatpush1.msra.mxu0 %v1050
    %1103 = vmatprep.subr.mxu0 0.0
    %1104 = vmatpush1.msra.mxu0 %v1051
    %1105 = vmatprep.subr.mxu0 0.0
    %1106 = vmatpush1.msra.mxu0 %v1052
    %1107 = vmatprep.subr.mxu0 0.0
    %1108 = vmatpush1.msra.mxu0 %v1053
    %1109 = vmatprep.subr.mxu0 0.0
    %1110 = vmatpush1.msra.mxu0 %v1054
    %1111 = vmatprep.subr.mxu0 0.0
    %1112 = vmatpush1.msra.mxu0 0.0
    %1113 = vmatprep.subr.mxu0 0.0
    %1114 = vmatpush1.msra.mxu0 0.0
    %1115 = vmatprep.subr.mxu0 0.0
    %1116 = vmatpush1.msra.mxu0 0.0
    %1117 = vmatprep.subr.mxu0 0.0
    %1118 = vmatpush1.msra.mxu0 0.0
    %1119 = vmatprep.subr.mxu0 0.0
    %1120 = vmatpush1.msra.mxu0 0.0
    %1121 = vmatprep.subr.mxu0 0.0
    %1122 = vmatpush1.msra.mxu0 0.0
    %1123 = vmatprep.subr.mxu0 0.0
    %1124 = vmatpush1.msra.mxu0 0.0
    %1125 = vmatprep.subr.mxu0 0.0
    %1126 = vmatpush1.msra.mxu0 0.0
    %1127 = vmatprep.subr.mxu0 0.0
    %1128 = vmatpush1.msra.mxu0 0.0
    %1129 = vmatprep.subr.mxu0 0.0
    %1130 = vmatpush1.msra.mxu0 0.0
    %1131 = vmatprep.subr.mxu0 0.0
    %1132 = vmatpush1.msra.mxu0 0.0
    %1133 = vmatprep.subr.mxu0 0.0
    %1134 = vmatpush1.msra.mxu0 0.0
    %1135 = vmatprep.subr.mxu0 0.0
    %1136 = vmatpush1.msra.mxu0 0.0
    %1137 = vmatprep.subr.mxu0 0.0
    %1138 = vmatpush1.msra.mxu0 0.0
    %1139 = vmatprep.subr.mxu0 0.0
    %1140 = vmatpush1.msra.mxu0 0.0
    %1141 = vmatprep.subr.mxu0 0.0
    %1142 = vmatpush1.msra.mxu0 0.0
    %1143 = vmatprep.subr.mxu0 0.0
    %1144 = vmatpush1.msra.mxu0 0.0
    %1145 = vmatprep.subr.mxu0 0.0
    %1146 = vmatpush1.msra.mxu0 0.0
    %1147 = vmatprep.subr.mxu0 0.0
    %1148 = vmatpush1.msra.mxu0 0.0
    %1149 = vmatprep.subr.mxu0 0.0
    %1150 = vmatpush1.msra.mxu0 0.0
    %1151 = vmatprep.subr.mxu0 0.0
    %1152 = vmatpush1.msra.mxu0 0.0
    %1153 = vmatprep.subr.mxu0 0.0
    %1154 = vmatpush1.msra.mxu0 0.0
    %1155 = vmatprep.subr.mxu0 0.0
    %1156 = vmatpush1.msra.mxu0 0.0
    %1157 = vmatprep.subr.mxu0 0.0
    %1158 = vmatpush1.msra.mxu0 0.0
    %1159 = vmatprep.subr.mxu0 0.0
    %1160 = vmatpush1.msra.mxu0 0.0
    %1161 = vmatprep.subr.mxu0 0.0
    %1162 = vmatpush1.msra.mxu0 0.0
    %1163 = vmatprep.mubr.f32.mxu0 0.0
    %1164 = vmatmul.mubr.f32.gmra.mrb[0].mxu0 %v1088
    %v1165 = vpop.f32.mrb[0].mxu0
    %v1166 = vadd.f32 0.0, %v1165
    %v1167 = vpop.f32.mrb[0].mxu0
    %1168 = vmatprep.mubr.f32.mxu0 0.0
    %1169 = vmatmul.mubr.f32.gmra.mrb[0].mxu0 %v1091
    %v1170 = vpop.f32.mrb[0].mxu0
    %v1171 = vadd.f32 0.0, %v1170
    %v1172 = vpop.f32.mrb[0].mxu0
    %1173 = vmatprep.mubr.f32.mxu0 0.0
    %1174 = vmatmul.mubr.f32.gmra.mrb[0].mxu0 %v1094
    %v1175 = vpop.f32.mrb[0].mxu0
    %v1176 = vadd.f32 0.0, %v1175
    %v1177 = vpop.f32.mrb[0].mxu0
    %1178 = vmatprep.mubr.f32.mxu0 0.0
    %1179 = vmatmul.mubr.f32.gmra.mrb[0].mxu0 %v1097
    %v1180 = vpop.f32.mrb[0].mxu0
    %v1181 = vadd.f32 0.0, %v1180
    %v1182 = vpop.f32.mrb[0].mxu0
    %1183 = vdwg.mxu0
    %1190 = vrot.lane.b32.xlu0 %v1020, 96
    %v1191 = vpop.permute.xlu0 %1190
    %1192 = vrot.lane.b32.xlu0 %v1025, 96
    %v1193 = vpop.permute.xlu0 %1192
    %1194 = vrot.lane.b32.xlu0 %v1030, 96
    %v1195 = vpop.permute.xlu0 %1194
    %1196 = vrot.lane.b32.xlu0 %v1035, 96
    %v1197 = vpop.permute.xlu0 %1196
    %1198 = vrot.lane.b32.xlu0 %v1040, 96
    %v1199 = vpop.permute.xlu0 %1198
    %1200 = vrot.lane.b32.xlu0 %v1045, 96
    %v1201 = vpop.permute.xlu0 %1200
    %vm1208 = vcmask 1048320
    %1209 = vst.msk [vmem:[#allocation2] sm:$0xff] %vm1208, %v1191
    %1210 = vst.msk [vmem:[#allocation2 + $0x8] sm:$0xff] %vm1208, %v1193
    %1211 = vst.msk [vmem:[#allocation2 + $0x10] sm:$0xff] %vm1208, %v1195
    %1212 = vst.msk [vmem:[#allocation2 + $0x18] sm:$0xff] %vm1208, %v1197
    %1213 = vst.msk [vmem:[#allocation2 + $0x20] sm:$0xff] %vm1208, %v1199
    %1214 = vst.msk [vmem:[#allocation2 + $0x28] sm:$0xff] %vm1208, %v1201
    %1219 = vrot.lane.b32.xlu0 %v1166, 96
    %v1220 = vpop.permute.xlu0 %1219
    %1221 = vrot.lane.b32.xlu0 %v1171, 96
    %v1222 = vpop.permute.xlu0 %1221
    %1223 = vrot.lane.b32.xlu0 %v1176, 96
    %v1224 = vpop.permute.xlu0 %1223
    %1225 = vrot.lane.b32.xlu0 %v1181, 96
    %v1226 = vpop.permute.xlu0 %1225
    %1231 = vst.msk [vmem:[#allocation4] sm:$0xff] %vm1208, %v1220
    %1232 = vst.msk [vmem:[#allocation4 + $0x8] sm:$0xff] %vm1208, %v1222
    %1233 = vst.msk [vmem:[#allocation4 + $0x10] sm:$0xff] %vm1208, %v1224
    %1234 = vst.msk [vmem:[#allocation4 + $0x18] sm:$0xff] %vm1208, %v1226
    %v1235 = vadd.f32 %v125, %v396
    %v1236 = vadd.f32 %v130, %v401
    %v1237 = vadd.f32 %v135, %v406
    %v1238 = vadd.f32 %v140, %v411
    %v1239 = vadd.f32 %v145, %v416
    %v1240 = vadd.f32 %v150, %v421
    %v1241 = vadd.f32 %v271, %v542
    %v1242 = vadd.f32 %v276, %v547
    %v1243 = vadd.f32 %v281, %v552
    %v1244 = vadd.f32 %v286, %v557
    %v1245 = vadd.f32 %v1235, %v708
    %v1246 = vadd.f32 %v1236, %v713
    %v1247 = vadd.f32 %v1237, %v718
    %v1248 = vadd.f32 %v1238, %v723
    %v1249 = vadd.f32 %v1239, %v728
    %v1250 = vadd.f32 %v1240, %v733
    %v1251 = vadd.f32 %v1241, %v854
    %v1252 = vadd.f32 %v1242, %v859
    %v1253 = vadd.f32 %v1243, %v864
    %v1254 = vadd.f32 %v1244, %v869
    %v1255 = vadd.f32 %v1245, %v1020
    %v1256 = vadd.f32 %v1246, %v1025
    %v1257 = vadd.f32 %v1247, %v1030
    %v1258 = vadd.f32 %v1248, %v1035
    %v1259 = vadd.f32 %v1249, %v1040
    %v1260 = vadd.f32 %v1250, %v1045
    %v1261 = vadd.f32 %v1251, %v1166
    %v1262 = vadd.f32 %v1252, %v1171
    %v1263 = vadd.f32 %v1253, %v1176
    %v1264 = vadd.f32 %v1254, %v1181
    %v1265 = vmul.f32 %v1255, 0.25
    %v1266 = vmul.f32 %v1256, 0.25
    %v1267 = vmul.f32 %v1257, 0.25
    %v1268 = vmul.f32 %v1258, 0.25
    %v1269 = vmul.f32 %v1259, 0.25
    %v1270 = vmul.f32 %v1260, 0.25
    %v1271 = vmul.f32 %v1261, 0.25
    %v1272 = vmul.f32 %v1262, 0.25
    %v1273 = vmul.f32 %v1263, 0.25
    %v1274 = vmul.f32 %v1264, 0.25
    %v1275 = vld [vmem:[%s3] sm:$0xff]
    %v1276 = vld [vmem:[%s3 + $0x8] sm:$0xff]
    %v1277 = vld [vmem:[%s3 + $0x10] sm:$0xff]
    %v1278 = vld [vmem:[%s3 + $0x18] sm:$0xff]
    %v1280 = vsel %vm39, %v1265, 0
    %v1283 = vsel %vm39, %v1266, 0
    %v1286 = vsel %vm39, %v1267, 0
    %v1289 = vsel %vm39, %v1268, 0
    %v1292 = vsel %vm39, %v1269, 0
    %v1295 = vsel %vm39, %v1270, 0
    %1297 = vmatprep.subr.mxu0 0.0
    %1298 = vmatpush1.msra.mxu0 %v1275
    %1299 = vmatprep.subr.mxu0 0.0
    %1300 = vmatpush1.msra.mxu0 %v1276
    %1301 = vmatprep.subr.mxu0 0.0
    %1302 = vmatpush1.msra.mxu0 %v1277
    %1303 = vmatprep.subr.mxu0 0.0
    %1304 = vmatpush1.msra.mxu0 %v1278
    %1305 = vmatprep.subr.mxu0 0.0
    %1306 = vmatpush1.msra.mxu0 0.0
    %1307 = vmatprep.subr.mxu0 0.0
    %1308 = vmatpush1.msra.mxu0 0.0
    %1309 = vmatprep.subr.mxu0 0.0
    %1310 = vmatpush1.msra.mxu0 0.0
    %1311 = vmatprep.subr.mxu0 0.0
    %1312 = vmatpush1.msra.mxu0 0.0
    %1313 = vmatprep.subr.mxu0 0.0
    %1314 = vmatpush1.msra.mxu0 0.0
    %1315 = vmatprep.subr.mxu0 0.0
    %1316 = vmatpush1.msra.mxu0 0.0
    %1317 = vmatprep.subr.mxu0 0.0
    %1318 = vmatpush1.msra.mxu0 0.0
    %1319 = vmatprep.subr.mxu0 0.0
    %1320 = vmatpush1.msra.mxu0 0.0
    %1321 = vmatprep.subr.mxu0 0.0
    %1322 = vmatpush1.msra.mxu0 0.0
    %1323 = vmatprep.subr.mxu0 0.0
    %1324 = vmatpush1.msra.mxu0 0.0
    %1325 = vmatprep.subr.mxu0 0.0
    %1326 = vmatpush1.msra.mxu0 0.0
    %1327 = vmatprep.subr.mxu0 0.0
    %1328 = vmatpush1.msra.mxu0 0.0
    %1329 = vmatprep.subr.mxu0 0.0
    %1330 = vmatpush1.msra.mxu0 0.0
    %1331 = vmatprep.subr.mxu0 0.0
    %1332 = vmatpush1.msra.mxu0 0.0
    %1333 = vmatprep.subr.mxu0 0.0
    %1334 = vmatpush1.msra.mxu0 0.0
    %1335 = vmatprep.subr.mxu0 0.0
    %1336 = vmatpush1.msra.mxu0 0.0
    %1337 = vmatprep.subr.mxu0 0.0
    %1338 = vmatpush1.msra.mxu0 0.0
    %1339 = vmatprep.subr.mxu0 0.0
    %1340 = vmatpush1.msra.mxu0 0.0
    %1341 = vmatprep.subr.mxu0 0.0
    %1342 = vmatpush1.msra.mxu0 0.0
    %1343 = vmatprep.subr.mxu0 0.0
    %1344 = vmatpush1.msra.mxu0 0.0
    %1345 = vmatprep.subr.mxu0 0.0
    %1346 = vmatpush1.msra.mxu0 0.0
    %1347 = vmatprep.subr.mxu0 0.0
    %1348 = vmatpush1.msra.mxu0 0.0
    %1349 = vmatprep.subr.mxu0 0.0
    %1350 = vmatpush1.msra.mxu0 0.0
    %1351 = vmatprep.subr.mxu0 0.0
    %1352 = vmatpush1.msra.mxu0 0.0
    %1353 = vmatprep.subr.mxu0 0.0
    %1354 = vmatpush1.msra.mxu0 0.0
    %1355 = vmatprep.subr.mxu0 0.0
    %1356 = vmatpush1.msra.mxu0 0.0
    %1357 = vmatprep.subr.mxu0 0.0
    %1358 = vmatpush1.msra.mxu0 0.0
    %1359 = vmatprep.subr.mxu0 0.0
    %1360 = vmatpush1.msra.mxu0 0.0
    %1361 = vmatprep.mubr.f32.mxu0 0.0
    %1362 = vmatmul.mubr.f32.gmra.mrb[0].mxu0 %v1280
    %v1363 = vpop.f32.mrb[0].mxu0
    %v1364 = vadd.f32 0.0, %v1363
    %v1365 = vpop.f32.mrb[0].mxu0
    %1366 = vmatprep.mubr.f32.mxu0 0.0
    %1367 = vmatmul.mubr.f32.gmra.mrb[0].mxu0 %v1283
    %v1368 = vpop.f32.mrb[0].mxu0
    %v1369 = vadd.f32 0.0, %v1368
    %v1370 = vpop.f32.mrb[0].mxu0
    %1371 = vmatprep.mubr.f32.mxu0 0.0
    %1372 = vmatmul.mubr.f32.gmra.mrb[0].mxu0 %v1286
    %v1373 = vpop.f32.mrb[0].mxu0
    %v1374 = vadd.f32 0.0, %v1373
    %v1375 = vpop.f32.mrb[0].mxu0
    %1376 = vmatprep.mubr.f32.mxu0 0.0
    %1377 = vmatmul.mubr.f32.gmra.mrb[0].mxu0 %v1289
    %v1378 = vpop.f32.mrb[0].mxu0
    %v1379 = vadd.f32 0.0, %v1378
    %v1380 = vpop.f32.mrb[0].mxu0
    %1381 = vmatprep.mubr.f32.mxu0 0.0
    %1382 = vmatmul.mubr.f32.gmra.mrb[0].mxu0 %v1292
    %v1383 = vpop.f32.mrb[0].mxu0
    %v1384 = vadd.f32 0.0, %v1383
    %v1385 = vpop.f32.mrb[0].mxu0
    %1386 = vmatprep.mubr.f32.mxu0 0.0
    %1387 = vmatmul.mubr.f32.gmra.mrb[0].mxu0 %v1295
    %v1388 = vpop.f32.mrb[0].mxu0
    %v1389 = vadd.f32 0.0, %v1388
    %v1390 = vpop.f32.mrb[0].mxu0
    %1391 = vdwg.mxu0
    %v1392 = vxor.u32 %v1364, 2147483648
    %v1393 = vxor.u32 %v1369, 2147483648
    %v1394 = vxor.u32 %v1374, 2147483648
    %v1395 = vxor.u32 %v1379, 2147483648
    %v1396 = vxor.u32 %v1384, 2147483648
    %v1397 = vxor.u32 %v1389, 2147483648
    %v1398 = vmul.f32 %v1392, 1.442695
    %v1399 = vpow.pop %v1398
    %v1400 = vmul.f32 %v1393, 1.442695
    %v1401 = vpow.pop %v1400
    %v1402 = vmul.f32 %v1394, 1.442695
    %v1403 = vpow.pop %v1402
    %v1404 = vmul.f32 %v1395, 1.442695
    %v1405 = vpow.pop %v1404
    %v1406 = vmul.f32 %v1396, 1.442695
    %v1407 = vpow.pop %v1406
    %v1408 = vmul.f32 %v1397, 1.442695
    %v1409 = vpow.pop %v1408
    %v1410 = vadd.f32 %v1399, 1.0
    %v1411 = vadd.f32 %v1401, 1.0
    %v1412 = vadd.f32 %v1403, 1.0
    %v1413 = vadd.f32 %v1405, 1.0
    %v1414 = vadd.f32 %v1407, 1.0
    %v1415 = vadd.f32 %v1409, 1.0
    %v1416 = vrcp.pop %v1410
    %v1417 = vmul.f32 1.0, %v1416
    %v1418 = vrcp.pop %v1411
    %v1419 = vmul.f32 1.0, %v1418
    %v1420 = vrcp.pop %v1412
    %v1421 = vmul.f32 1.0, %v1420
    %v1422 = vrcp.pop %v1413
    %v1423 = vmul.f32 1.0, %v1422
    %v1424 = vrcp.pop %v1414
    %v1425 = vmul.f32 1.0, %v1424
    %v1426 = vrcp.pop %v1415
    %v1427 = vmul.f32 1.0, %v1426
    %vm1428 = vcmask 130048
    %1429 = vst.msk [vmem:[%s5] sm:$0xff] %vm1428, %v1417
    %1430 = vst.msk [vmem:[%s5 + $0x8] sm:$0xff] %vm1428, %v1419
    %1431 = vst.msk [vmem:[%s5 + $0x10] sm:$0xff] %vm1428, %v1421
    %1432 = vst.msk [vmem:[%s5 + $0x18] sm:$0xff] %vm1428, %v1423
    %1433 = vst.msk [vmem:[%s5 + $0x20] sm:$0xff] %vm1428, %v1425
    %1434 = vst.msk [vmem:[%s5 + $0x28] sm:$0xff] %vm1428, %v1427
    %v1435 = vld [vmem:[%s4] sm:$0xff]
    %v1436 = vld [vmem:[%s4 + $0x8] sm:$0xff]
    %v1437 = vld [vmem:[%s4 + $0x10] sm:$0xff]
    %v1438 = vld [vmem:[%s4 + $0x18] sm:$0xff]
    %v1440 = vsel %vm39, %v1271, 0
    %v1443 = vsel %vm39, %v1272, 0
    %v1446 = vsel %vm39, %v1273, 0
    %v1449 = vsel %vm39, %v1274, 0
    %1451 = vmatprep.subr.mxu0 0.0
    %1452 = vmatpush1.msra.mxu0 %v1435
    %1453 = vmatprep.subr.mxu0 0.0
    %1454 = vmatpush1.msra.mxu0 %v1436
    %1455 = vmatprep.subr.mxu0 0.0
    %1456 = vmatpush1.msra.mxu0 %v1437
    %1457 = vmatprep.subr.mxu0 0.0
    %1458 = vmatpush1.msra.mxu0 %v1438
    %1459 = vmatprep.subr.mxu0 0.0
    %1460 = vmatpush1.msra.mxu0 0.0
    %1461 = vmatprep.subr.mxu0 0.0
    %1462 = vmatpush1.msra.mxu0 0.0
    %1463 = vmatprep.subr.mxu0 0.0
    %1464 = vmatpush1.msra.mxu0 0.0
    %1465 = vmatprep.subr.mxu0 0.0
    %1466 = vmatpush1.msra.mxu0 0.0
    %1467 = vmatprep.subr.mxu0 0.0
    %1468 = vmatpush1.msra.mxu0 0.0
    %1469 = vmatprep.subr.mxu0 0.0
    %1470 = vmatpush1.msra.mxu0 0.0
    %1471 = vmatprep.subr.mxu0 0.0
    %1472 = vmatpush1.msra.mxu0 0.0
    %1473 = vmatprep.subr.mxu0 0.0
    %1474 = vmatpush1.msra.mxu0 0.0
    %1475 = vmatprep.subr.mxu0 0.0
    %1476 = vmatpush1.msra.mxu0 0.0
    %1477 = vmatprep.subr.mxu0 0.0
    %1478 = vmatpush1.msra.mxu0 0.0
    %1479 = vmatprep.subr.mxu0 0.0
    %1480 = vmatpush1.msra.mxu0 0.0
    %1481 = vmatprep.subr.mxu0 0.0
    %1482 = vmatpush1.msra.mxu0 0.0
    %1483 = vmatprep.subr.mxu0 0.0
    %1484 = vmatpush1.msra.mxu0 0.0
    %1485 = vmatprep.subr.mxu0 0.0
    %1486 = vmatpush1.msra.mxu0 0.0
    %1487 = vmatprep.subr.mxu0 0.0
    %1488 = vmatpush1.msra.mxu0 0.0
    %1489 = vmatprep.subr.mxu0 0.0
    %1490 = vmatpush1.msra.mxu0 0.0
    %1491 = vmatprep.subr.mxu0 0.0
    %1492 = vmatpush1.msra.mxu0 0.0
    %1493 = vmatprep.subr.mxu0 0.0
    %1494 = vmatpush1.msra.mxu0 0.0
    %1495 = vmatprep.subr.mxu0 0.0
    %1496 = vmatpush1.msra.mxu0 0.0
    %1497 = vmatprep.subr.mxu0 0.0
    %1498 = vmatpush1.msra.mxu0 0.0
    %1499 = vmatprep.subr.mxu0 0.0
    %1500 = vmatpush1.msra.mxu0 0.0
    %1501 = vmatprep.subr.mxu0 0.0
    %1502 = vmatpush1.msra.mxu0 0.0
    %1503 = vmatprep.subr.mxu0 0.0
    %1504 = vmatpush1.msra.mxu0 0.0
    %1505 = vmatprep.subr.mxu0 0.0
    %1506 = vmatpush1.msra.mxu0 0.0
    %1507 = vmatprep.subr.mxu0 0.0
    %1508 = vmatpush1.msra.mxu0 0.0
    %1509 = vmatprep.subr.mxu0 0.0
    %1510 = vmatpush1.msra.mxu0 0.0
    %1511 = vmatprep.subr.mxu0 0.0
    %1512 = vmatpush1.msra.mxu0 0.0
    %1513 = vmatprep.subr.mxu0 0.0
    %1514 = vmatpush1.msra.mxu0 0.0
    %1515 = vmatprep.mubr.f32.mxu0 0.0
    %1516 = vmatmul.mubr.f32.gmra.mrb[0].mxu0 %v1440
    %v1517 = vpop.f32.mrb[0].mxu0
    %v1518 = vadd.f32 0.0, %v1517
    %v1519 = vpop.f32.mrb[0].mxu0
    %1520 = vmatprep.mubr.f32.mxu0 0.0
    %1521 = vmatmul.mubr.f32.gmra.mrb[0].mxu0 %v1443
    %v1522 = vpop.f32.mrb[0].mxu0
    %v1523 = vadd.f32 0.0, %v1522
    %v1524 = vpop.f32.mrb[0].mxu0
    %1525 = vmatprep.mubr.f32.mxu0 0.0
    %1526 = vmatmul.mubr.f32.gmra.mrb[0].mxu0 %v1446
    %v1527 = vpop.f32.mrb[0].mxu0
    %v1528 = vadd.f32 0.0, %v1527
    %v1529 = vpop.f32.mrb[0].mxu0
    %1530 = vmatprep.mubr.f32.mxu0 0.0
    %1531 = vmatmul.mubr.f32.gmra.mrb[0].mxu0 %v1449
    %v1532 = vpop.f32.mrb[0].mxu0
    %v1533 = vadd.f32 0.0, %v1532
    %v1534 = vpop.f32.mrb[0].mxu0
    %1535 = vdwg.mxu0
    %v1536 = vxor.u32 %v1518, 2147483648
    %v1537 = vxor.u32 %v1523, 2147483648
    %v1538 = vxor.u32 %v1528, 2147483648
    %v1539 = vxor.u32 %v1533, 2147483648
    %v1540 = vmul.f32 %v1536, 1.442695
    %v1541 = vpow.pop %v1540
    %v1542 = vmul.f32 %v1537, 1.442695
    %v1543 = vpow.pop %v1542
    %v1544 = vmul.f32 %v1538, 1.442695
    %v1545 = vpow.pop %v1544
    %v1546 = vmul.f32 %v1539, 1.442695
    %v1547 = vpow.pop %v1546
    %v1548 = vadd.f32 %v1541, 1.0
    %v1549 = vadd.f32 %v1543, 1.0
    %v1550 = vadd.f32 %v1545, 1.0
    %v1551 = vadd.f32 %v1547, 1.0
    %v1552 = vrcp.pop %v1548
    %v1553 = vmul.f32 1.0, %v1552
    %v1554 = vrcp.pop %v1549
    %v1555 = vmul.f32 1.0, %v1554
    %v1556 = vrcp.pop %v1550
    %v1557 = vmul.f32 1.0, %v1556
    %v1558 = vrcp.pop %v1551
    %v1559 = vmul.f32 1.0, %v1558
    %1560 = vst.msk [vmem:[%s6] sm:$0xff] %vm1428, %v1553
    %1561 = vst.msk [vmem:[%s6 + $0x8] sm:$0xff] %vm1428, %v1555
    %1562 = vst.msk [vmem:[%s6 + $0x10] sm:$0xff] %vm1428, %v1557
    %1563 = vst.msk [vmem:[%s6 + $0x18] sm:$0xff] %vm1428, %v1559
    %v1564 = vld [vmem:[#allocation2] sm:$0xff]
    %v1565 = vld [vmem:[#allocation2 + $0x8] sm:$0xff]
    %v1566 = vld [vmem:[#allocation2 + $0x10] sm:$0xff]
    %v1567 = vld [vmem:[#allocation2 + $0x18] sm:$0xff]
    %v1568 = vld [vmem:[#allocation2 + $0x20] sm:$0xff]
    %v1569 = vld [vmem:[#allocation2 + $0x28] sm:$0xff]
    %v1570 = vld [vmem:[#allocation4] sm:$0xff]
    %v1571 = vld [vmem:[#allocation4 + $0x8] sm:$0xff]
    %v1572 = vld [vmem:[#allocation4 + $0x10] sm:$0xff]
    %v1573 = vld [vmem:[#allocation4 + $0x18] sm:$0xff]
    %v1574 = vmul.f32 %v1564, %v1564
    %v1575 = vmul.f32 %v1565, %v1565
    %v1576 = vmul.f32 %v1566, %v1566
    %v1577 = vmul.f32 %v1567, %v1567
    %v1578 = vmul.f32 %v1568, %v1568
    %v1579 = vmul.f32 %v1569, %v1569
    %v1580 = vadd.f32 %v1574, %v1575
    %v1581 = vadd.f32 %v1580, %v1576
    %v1582 = vadd.f32 %v1581, %v1577
    %v1583 = vadd.f32 %v1582, %v1578
    %v1584 = vadd.f32 %v1583, %v1579
    %v1585 = vrot.slane %v1584, 4
    %v1586 = vadd.f32 %v1584, %v1585
    %v1587 = vrot.slane %v1586, 2
    %v1588 = vadd.f32 %v1586, %v1587
    %v1589 = vrot.slane %v1588, 1
    %v1590 = vadd.f32 %v1588, %v1589
    %v1591 = vmul.f32 %v1570, %v1570
    %v1592 = vmul.f32 %v1571, %v1571
    %v1593 = vmul.f32 %v1572, %v1572
    %v1594 = vmul.f32 %v1573, %v1573
    %v1595 = vadd.f32 %v1591, %v1592
    %v1596 = vadd.f32 %v1595, %v1593
    %v1597 = vadd.f32 %v1596, %v1594
    %v1598 = vrot.slane %v1597, 4
    %v1599 = vadd.f32 %v1597, %v1598
    %v1600 = vrot.slane %v1599, 2
    %v1601 = vadd.f32 %v1599, %v1600
    %v1602 = vrot.slane %v1601, 1
    %v1603 = vadd.f32 %v1601, %v1602
    %v1604 = vmax.f32 %v1590, 1e-24
    %v1605 = vrsqrt.pop %v1604
    %v1606 = vmul.f32 %v1564, %v1605
    %v1607 = vmul.f32 %v1565, %v1605
    %v1608 = vmul.f32 %v1566, %v1605
    %v1609 = vmul.f32 %v1567, %v1605
    %v1610 = vmul.f32 %v1568, %v1605
    %v1611 = vmul.f32 %v1569, %v1605
    %1612 = vst [vmem:[#allocation6] sm:$0xff] %v1606
    %1613 = vst [vmem:[#allocation6 + $0x8] sm:$0xff] %v1607
    %1614 = vst [vmem:[#allocation6 + $0x10] sm:$0xff] %v1608
    %1615 = vst [vmem:[#allocation6 + $0x18] sm:$0xff] %v1609
    %1616 = vst [vmem:[#allocation6 + $0x20] sm:$0xff] %v1610
    %1617 = vst [vmem:[#allocation6 + $0x28] sm:$0xff] %v1611
    %v1618 = vmax.f32 %v1603, 1e-24
    %v1619 = vrsqrt.pop %v1618
    %v1620 = vmul.f32 %v1570, %v1619
    %v1621 = vmul.f32 %v1571, %v1619
    %v1622 = vmul.f32 %v1572, %v1619
    %v1623 = vmul.f32 %v1573, %v1619
    %1624 = vst [vmem:[#allocation7] sm:$0xff] %v1620
    %1625 = vst [vmem:[#allocation7 + $0x8] sm:$0xff] %v1621
    %1626 = vst [vmem:[#allocation7 + $0x10] sm:$0xff] %v1622
    %1627 = vst [vmem:[#allocation7 + $0x18] sm:$0xff] %v1623
    // Predicated region
    $region22: #{tpu_custom_call.1} parent=1 // pred_check
      _
    $region23: #{tpu_custom_call.1} parent=1 // pred_check_branch
      %1629 = sbr.rel (0) target = $region25
    $region24: #{tpu_custom_call.1} parent=1 // pred_region
      _
    $region25: #{tpu_custom_call.1} parent=1 // pred_fallthru
      _
    // Predicated region
    $region26: #{tpu_custom_call.1} parent=1 // pred_check
      _
    $region27: #{tpu_custom_call.1} parent=1 // pred_check_branch
      %1631 = sbr.rel (0) target = $region29
    $region28: #{tpu_custom_call.1} parent=1 // pred_region
      _
    $region29: #{tpu_custom_call.1} parent=1 // pred_fallthru
      _
    // Predicated region
    $region30: #{tpu_custom_call.1} parent=1 // pred_check
      _
    $region31: #{tpu_custom_call.1} parent=1 // pred_check_branch
      %1633 = sbr.rel (0) target = $region33
    $region32: #{tpu_custom_call.1} parent=1 // pred_region
      %s1635 = ssub.s32 768, 768
      %1636 = vsyncadd [#allocation3], %s1635
      %s1637 = sshll.u32 [#allocation2], 4
      %s1638 = int_to_ptr.vmem [resolvable:$true] %s1637
      %1643 = dma.vmem_to_hbm [thread:$0]  %s1638, 768, %s7, [#allocation3], 128, 128, 8
    $region33: #{tpu_custom_call.1} parent=1 // pred_fallthru
      _
    // Predicated region
    $region34: #{tpu_custom_call.1} parent=1 // pred_check
      _
    $region35: #{tpu_custom_call.1} parent=1 // pred_check_branch
      %1645 = sbr.rel (0) target = $region37
    $region36: #{tpu_custom_call.1} parent=1 // pred_region
      %s1647 = ssub.s32 512, 512
      %1648 = vsyncadd [#allocation5], %s1647
      %s1649 = sshll.u32 [#allocation4], 4
      %s1650 = int_to_ptr.vmem [resolvable:$true] %s1649
      %1655 = dma.vmem_to_hbm [thread:$0]  %s1650, 512, %s8, [#allocation5], 128, 128, 8
    $region37: #{tpu_custom_call.1} parent=1 // pred_fallthru
      _
    // Predicated region
    $region38: #{tpu_custom_call.1} parent=1 // pred_check
      _
    $region39: #{tpu_custom_call.1} parent=1 // pred_check_branch
      %1657 = sbr.rel (0) target = $region41
    $region40: #{tpu_custom_call.1} parent=1 // pred_region
      %s1659 = ssub.s32 768, 768
      %1660 = vsyncadd [#allocation5], %s1659
      %s1661 = sshll.u32 [#allocation6], 4
      %s1662 = int_to_ptr.vmem [resolvable:$true] %s1661
      %1667 = dma.vmem_to_hbm [thread:$0]  %s1662, 768, %s9, [#allocation5], 128, 128, 8
    $region41: #{tpu_custom_call.1} parent=1 // pred_fallthru
      _
    // Predicated region
    $region42: #{tpu_custom_call.1} parent=1 // pred_check
      _
    $region43: #{tpu_custom_call.1} parent=1 // pred_check_branch
      %1669 = sbr.rel (0) target = $region45
    $region44: #{tpu_custom_call.1} parent=1 // pred_region
      %s1671 = ssub.s32 512, 512
      %1672 = vsyncadd [#allocation8], %s1671
      %s1673 = sshll.u32 [#allocation7], 4
      %s1674 = int_to_ptr.vmem [resolvable:$true] %s1673
      %1679 = dma.vmem_to_hbm [thread:$0]  %s1674, 512, %s10, [#allocation8], 128, 128, 8
    $region45: #{tpu_custom_call.1} parent=1 // pred_fallthru
      _
    // Predicated region
    $region46: #{tpu_custom_call.1} parent=1 // pred_check
      _
    $region47: #{tpu_custom_call.1} parent=1 // pred_check_branch
      %1681 = sbr.rel (0) target = $region49
    $region48: #{tpu_custom_call.1} parent=1 // pred_region
      _
    $region49: #{tpu_custom_call.1} parent=1 // pred_fallthru
      _
    // Predicated region
    $region50: #{tpu_custom_call.1} parent=1 // pred_check
      _
    $region51: #{tpu_custom_call.1} parent=1 // pred_check_branch
      %1683 = sbr.rel (0) target = $region53
    $region52: #{tpu_custom_call.1} parent=1 // pred_region
      _
    $region53: #{tpu_custom_call.1} parent=1 // pred_fallthru
      _
    // Predicated region
    $region54: #{tpu_custom_call.1} parent=1 // pred_check
      _
    $region55: #{tpu_custom_call.1} parent=1 // pred_check_branch
      %1685 = sbr.rel (0) target = $region57
    $region56: #{tpu_custom_call.1} parent=1 // pred_region
      %1686 = dma.done [#allocation3], 768
    $region57: #{tpu_custom_call.1} parent=1 // pred_fallthru
      _
    // Predicated region
    $region58: #{tpu_custom_call.1} parent=1 // pred_check
      _
    $region59: #{tpu_custom_call.1} parent=1 // pred_check_branch
      %1688 = sbr.rel (0) target = $region61
    $region60: #{tpu_custom_call.1} parent=1 // pred_region
      %1689 = dma.done [#allocation5], 512
    $region61: #{tpu_custom_call.1} parent=1 // pred_fallthru
      _
    // Predicated region
    $region62: #{tpu_custom_call.1} parent=1 // pred_check
      _
    $region63: #{tpu_custom_call.1} parent=1 // pred_check_branch
      %1691 = sbr.rel (0) target = $region65
    $region64: #{tpu_custom_call.1} parent=1 // pred_region
      %1692 = dma.done [#allocation5], 768
    $region65: #{tpu_custom_call.1} parent=1 // pred_fallthru
      _
    // Predicated region
    $region66: #{tpu_custom_call.1} parent=1 // pred_check
      _
    $region67: #{tpu_custom_call.1} parent=1 // pred_check_branch
      %1694 = sbr.rel (0) target = $region69
    $region68: #{tpu_custom_call.1} parent=1 // pred_region
      %1695 = dma.done [#allocation8], 512
    $region69: #{tpu_custom_call.1} parent=1 // pred_fallthru
      _
    %1696 = vsyncpa [#allocation3], 1
    %1697 = vsyncpa [#allocation5], 1
    %1698 = vsyncpa [#allocation8], 1

</llo_original>
